<compile_context>
chip_gen: v7x
topology: tpu7x:2x2x1
jax: 0.10.0
libtpu: 0.0.40
codegen_flags: <defaults>
</compile_context>

<pallas_src>
import functools
import math

import numpy as np
import jax
import jax.numpy as jnp
from jax.experimental import pallas as pl
from jax.experimental.pallas import tpu as pltpu

EPS = 1e-5  # PyTorch BatchNorm default eps


def _bn_rows(x, gamma, beta):
    """Training-mode BatchNorm over rows (per-channel stats, biased variance)."""
    mean = jnp.mean(x, axis=0, keepdims=True)
    var = jnp.mean((x - mean) ** 2, axis=0, keepdims=True)
    return (x - mean) * jax.lax.rsqrt(var + EPS) * gamma + beta


def cross_attention_block(context, params, num_heads, head_dim, multiplier):
    B, N, Dc = context.shape
    query = params["query"]
    L, Dq = query.shape
    H, Hd = num_heads, head_dim
    HD = H * Hd
    HL = H * L
    P = Dq * multiplier
    scale = 1.0 / math.sqrt(Hd)
    f32 = jnp.float32

    # ---- trace-time weight preparation (tiny XLA ops, fused into the jit) ----
    wkv = jnp.concatenate([params["wk"], params["wv"]], axis=1)           # (Dc, 2*HD)
    w1f = params["gamma_p"][:, None] * params["w1"]                        # proj_norm affine folded
    b1f = params["beta_p"] @ params["w1"] + params["b1"]                   # (P,)

    # pack all per-channel vectors into one lane-dense slab: one DMA, not nine.
    PW = -(-max(Dq, Dc, P) // 128) * 128

    def _row(v):
        v = jnp.asarray(v, f32).reshape(-1)
        return jnp.pad(v, (0, PW - v.shape[0]))

    prm_slab = jnp.stack([_row(params["gamma_q"]), _row(params["beta_q"]),
                          _row(params["gamma_c"]), _row(params["beta_c"]),
                          _row(params["bo"]),      _row(params["b2"]),
                          _row(b1f),               _row(params["gamma_h"]),
                          _row(params["beta_h"])])                         # (9, PW)

    # constant block-diagonal head mask: mask[(h,l), k] = 1 iff k // Hd == h.
    # Built host-side (pure compile-time constant) to avoid in-kernel integer
    # lane-index division / >2-D iota.
    headmask = jnp.asarray(
        np.kron(np.eye(H, dtype=np.float32), np.ones((L, Hd), np.float32)))  # (HL, HD)

    ctx2d = context.reshape(B * N, Dc)

    def kernel(q_ref, c_ref, wq_ref, wkv_ref, wo_ref, w1_ref, w2_ref, prm_ref,
               msk_ref, out_ref, attn_ref):
        prm = prm_ref[...]
        g_q, b_q = prm[0:1, :Dq], prm[1:2, :Dq]
        g_c, b_c = prm[2:3, :Dc], prm[3:4, :Dc]
        bo,  b2  = prm[4:5, :Dq], prm[5:6, :Dq]
        b1,  g_h, b_h = prm[6:7, :P], prm[7:8, :P], prm[8:9, :P]
        msk = msk_ref[...]                                                  # (HL, HD)

        # BatchNorms (training mode, biased variance).  Query BN is hoisted out
        # of the batch: stats over B identical broadcast copies == stats over
        # the single (L, Dq) copy.
        qn = _bn_rows(q_ref[...].astype(f32), g_q, b_q)                     # (L, Dq)
        cn = _bn_rows(c_ref[...].astype(f32), g_c, b_c)                     # (B*N, Dc)

        # Projections: plain 2-D MXU matmuls; K|V fused -> one 128-lane matmul.
        Q2 = jnp.dot(qn, wq_ref[...].astype(f32),
                     preferred_element_type=f32) * scale                    # (L, HD)
        KV = jnp.dot(cn, wkv_ref[...].astype(f32),
                     preferred_element_type=f32)                            # (B*N, 2HD)
        K3 = KV[:, :HD].reshape(B, N, HD)                                   # (B, N, HD)
        V3 = KV[:, HD:].reshape(B, N, HD)

        # Block-row Q: rows enumerate (h, l); the mask zeroes all lanes outside
        # head h, so contracting against full-width K keeps heads separate.
        Qblk = jnp.broadcast_to(Q2[None], (H, L, HD)).reshape(HL, HD) * msk  # (HL, HD)
        Qb = jnp.broadcast_to(Qblk[None], (B, HL, HD))                       # B-fold only

        # Scores + exact softmax (exact divide -> attn map matches torch).
        s = jnp.einsum('bmk,bnk->bmn', Qb, K3,
                       preferred_element_type=f32)                          # (B, HL, N)
        s = s - jnp.max(s, axis=-1, keepdims=True)
        e = jnp.exp(s)
        p = e / jnp.sum(e, axis=-1, keepdims=True)

        # Attention map stored as (B*H*L, N) rows; wrapper reshape only.
        attn_ref[...] = p.reshape(B * HL, N).astype(attn_ref.dtype)

        # attn @ V at full width, mask each row back to its head's lanes, then
        # one output projection; summing the H row-blocks == concat(heads) @ wo.
        o = jnp.einsum('bmn,bnk->bmk', p, V3,
                       preferred_element_type=f32)                          # (B, HL, HD)
        om = (o * msk).reshape(B * HL, HD)
        xr = jnp.dot(om, wo_ref[...].astype(f32),
                     preferred_element_type=f32)                            # (B*HL, Dq)

        xr4 = xr.reshape(B, H, L, Dq)
        xsum = xr4[:, 0]                      # leading-axis block sum, unrolled:
        for h in range(1, H):                 # H-1 VPU adds on (B, L, Dq) tiles
            xsum = xsum + xr4[:, h]
        x = xsum.reshape(B * L, Dq) + bo                                    # (B*L, Dq)

        # proj_norm: affine folded into w1/b1 at trace time, stats in-kernel.
        xm = jnp.mean(x, axis=0, keepdims=True)
        xv = jnp.mean((x - xm) ** 2, axis=0, keepdims=True)
        xhat = (x - xm) * jax.lax.rsqrt(xv + EPS)

        # proj: Linear -> BatchNorm1d -> QuickGELU -> Linear
        h1 = jnp.dot(xhat, w1_ref[...].astype(f32),
                     preferred_element_type=f32) + b1                       # (B*L, P)
        hn = _bn_rows(h1, g_h, b_h)
        act = hn * jax.nn.sigmoid(1.702 * hn)                               # QuickGELU
        out = jnp.dot(act, w2_ref[...].astype(f32),
                      preferred_element_type=f32) + b2
        out_ref[...] = out.astype(out_ref.dtype)

    vmem = pl.BlockSpec(memory_space=pltpu.MemorySpace.VMEM)
    out2d, attn2d = pl.pallas_call(
        kernel,
        out_shape=(jax.ShapeDtypeStruct((B * L, Dq), f32),
                   jax.ShapeDtypeStruct((B * HL, N), f32)),
        in_specs=[vmem] * 9,
        out_specs=(vmem, vmem),
    )(query, ctx2d, params["wq"], wkv, params["wo"], w1f, params["w2"],
      prm_slab, headmask)

    x = out2d.reshape(B, L, Dq)
    attn = attn2d.reshape(B, H, L, N)
    return x, attn


def _reference_forward(context, params, H, Hd, multiplier):
    """Pure-JAX reference with identical (training-mode BN) semantics."""
    B, N, Dc = context.shape
    q = params["query"]
    L, Dq = q.shape
    HD = H * Hd

    def bn(x, g, b):
        m = jnp.mean(x, axis=0, keepdims=True)
        v = jnp.mean((x - m) ** 2, axis=0, keepdims=True)
        return (x - m) / jnp.sqrt(v + EPS) * g + b

    qn = bn(jnp.broadcast_to(q[None], (B, L, Dq)).reshape(B * L, Dq),
            params["gamma_q"], params["beta_q"]).reshape(B, L, Dq)
    cn = bn(context.reshape(B * N, Dc),
            params["gamma_c"], params["beta_c"]).reshape(B, N, Dc)
    Q = (qn @ params["wq"]).reshape(B, L, H, Hd)
    K = (cn @ params["wk"]).reshape(B, N, H, Hd)
    V = (cn @ params["wv"]).reshape(B, N, H, Hd)
    s = jnp.einsum('blhd,bnhd->bhln', Q, K) / math.sqrt(Hd)
    p = jax.nn.softmax(s, axis=-1)
    o = jnp.einsum('bhln,bnhd->blhd', p, V).reshape(B * L, HD)
    x = o @ params["wo"] + params["bo"]
    x = bn(x, params["gamma_p"], params["beta_p"])
    h1 = x @ params["w1"] + params["b1"]
    h1 = bn(h1, params["gamma_h"], params["beta_h"])
    act = h1 * jax.nn.sigmoid(1.702 * h1)
    out = act @ params["w2"] + params["b2"]
    return out.reshape(B, L, Dq), p


if __name__ == "__main__":
    # Small shapes consistent with the module.
    B, N_ctx = 2, 16
    num_queries, query_dim, context_dim = 8, 32, 32
    num_heads, head_dim, multiplier = 4, 16, 4
    HD = num_heads * head_dim
    P = query_dim * multiplier

    key = jax.random.PRNGKey(0)
    ks = jax.random.split(key, 12)

    def w(k, shape, s=0.05):
        return jax.random.normal(k, shape, jnp.float32) * s

    params = dict(
        query=jax.random.normal(ks[0], (num_queries, query_dim), jnp.float32),
        gamma_q=jnp.ones((query_dim,), jnp.float32),
        beta_q=jnp.zeros((query_dim,), jnp.float32),
        gamma_c=jnp.ones((context_dim,), jnp.float32),
        beta_c=jnp.zeros((context_dim,), jnp.float32),
        # GMHCA weights stored (in, out); qkv_bias=False, to_out has bias.
        wq=w(ks[1], (query_dim, HD)),
        wk=w(ks[2], (context_dim, HD)),
        wv=w(ks[3], (context_dim, HD)),
        wo=w(ks[4], (HD, query_dim)),
        bo=w(ks[5], (query_dim,)),
        gamma_p=jnp.ones((query_dim,), jnp.float32),
        beta_p=jnp.zeros((query_dim,), jnp.float32),
        w1=w(ks[6], (query_dim, P)),
        b1=w(ks[7], (P,)),
        gamma_h=jnp.ones((P,), jnp.float32),
        beta_h=jnp.zeros((P,), jnp.float32),
        w2=w(ks[8], (P, query_dim)),
        b2=w(ks[9], (query_dim,)),
    )

    context = jax.random.normal(ks[10], (B, N_ctx, context_dim), jnp.float32)

    fwd = jax.jit(functools.partial(cross_attention_block,
                                    num_heads=num_heads, head_dim=head_dim,
                                    multiplier=multiplier))
    x, attn = fwd(context, params)
    jax.block_until_ready(x)
    jax.block_until_ready(attn)

    assert x.shape == (B, num_queries, query_dim), x.shape
    assert attn.shape == (B, num_heads, num_queries, N_ctx), attn.shape
    assert bool(jnp.all(jnp.isfinite(x))) and bool(jnp.all(jnp.isfinite(attn)))
    # exact softmax: rows sum to 1
    assert bool(jnp.allclose(jnp.sum(attn, axis=-1), 1.0, atol=1e-4))

    # pure-JAX reference check (loose tolerance covers MXU vs XLA f32 matmul
    # precision differences; a head-mixing / ordering bug would be O(1) off).
    x_ref, attn_map_ref = _reference_forward(context, params,
                                             num_heads, head_dim, multiplier)
    assert float(jnp.max(jnp.abs(x - x_ref))) < 3e-2
    assert float(jnp.max(jnp.abs(attn - attn_map_ref))) < 2e-2

    print("KERNEL_OK")
</pallas_src>

<mosaic_0001>
module attributes {stable_mosaic.version = 11 : i64} {
  func.func @kernel(%arg0: memref<8x32xf32, #tpu.memory_space<vmem>>, %arg1: memref<32x32xf32, #tpu.memory_space<vmem>>, %arg2: memref<32x64xf32, #tpu.memory_space<vmem>>, %arg3: memref<32x128xf32, #tpu.memory_space<vmem>>, %arg4: memref<64x32xf32, #tpu.memory_space<vmem>>, %arg5: memref<32x128xf32, #tpu.memory_space<vmem>>, %arg6: memref<128x32xf32, #tpu.memory_space<vmem>>, %arg7: memref<9x128xf32, #tpu.memory_space<vmem>>, %arg8: memref<32x64xf32, #tpu.memory_space<vmem>>, %arg9: memref<16x32xf32, #tpu.memory_space<vmem>>, %arg10: memref<64x16xf32, #tpu.memory_space<vmem>>) attributes {dimension_semantics = [], scalar_prefetch = 0 : i64, scratch_operands = 0 : i64, tpu.core_type = #tpu.core_type<tc>} {
    %c0 = arith.constant 0 : index
    %c0_0 = arith.constant 0 : index
    %0 = vector.load %arg7[%c0, %c0_0] : memref<9x128xf32, #tpu.memory_space<vmem>>, vector<9x128xf32>
    %1 = vector.extract_strided_slice %0 {offsets = [0, 0], sizes = [1, 32], strides = [1, 1]} : vector<9x128xf32> to vector<1x32xf32>
    %2 = vector.extract_strided_slice %0 {offsets = [1, 0], sizes = [1, 32], strides = [1, 1]} : vector<9x128xf32> to vector<1x32xf32>
    %3 = vector.extract_strided_slice %0 {offsets = [2, 0], sizes = [1, 32], strides = [1, 1]} : vector<9x128xf32> to vector<1x32xf32>
    %4 = vector.extract_strided_slice %0 {offsets = [3, 0], sizes = [1, 32], strides = [1, 1]} : vector<9x128xf32> to vector<1x32xf32>
    %5 = vector.extract_strided_slice %0 {offsets = [4, 0], sizes = [1, 32], strides = [1, 1]} : vector<9x128xf32> to vector<1x32xf32>
    %6 = vector.extract_strided_slice %0 {offsets = [5, 0], sizes = [1, 32], strides = [1, 1]} : vector<9x128xf32> to vector<1x32xf32>
    %7 = vector.extract_strided_slice %0 {offsets = [6, 0], sizes = [1, 128], strides = [1, 1]} : vector<9x128xf32> to vector<1x128xf32>
    %8 = vector.extract_strided_slice %0 {offsets = [7, 0], sizes = [1, 128], strides = [1, 1]} : vector<9x128xf32> to vector<1x128xf32>
    %9 = vector.extract_strided_slice %0 {offsets = [8, 0], sizes = [1, 128], strides = [1, 1]} : vector<9x128xf32> to vector<1x128xf32>
    %c0_1 = arith.constant 0 : index
    %c0_2 = arith.constant 0 : index
    %10 = vector.load %arg8[%c0_1, %c0_2] : memref<32x64xf32, #tpu.memory_space<vmem>>, vector<32x64xf32>
    %c0_3 = arith.constant 0 : index
    %c0_4 = arith.constant 0 : index
    %11 = vector.load %arg0[%c0_3, %c0_4] : memref<8x32xf32, #tpu.memory_space<vmem>>, vector<8x32xf32>
    %cst = arith.constant dense<0.000000e+00> : vector<32xf32>
    %12 = vector.multi_reduction <add>, %11, %cst [0] : vector<8x32xf32> to vector<32xf32>
    %13 = vector.shape_cast %12 : vector<32xf32> to vector<1x32xf32>
    %cst_5 = arith.constant 8.000000e+00 : f32
    %14 = vector.broadcast %cst_5 : f32 to vector<1x32xf32>
    %15 = arith.divf %13, %14 : vector<1x32xf32>
    %16 = vector.broadcast %15 : vector<1x32xf32> to vector<8x32xf32>
    %17 = arith.subf %11, %16 : vector<8x32xf32>
    %18 = arith.mulf %17, %17 : vector<8x32xf32>
    %cst_6 = arith.constant dense<0.000000e+00> : vector<32xf32>
    %19 = vector.multi_reduction <add>, %18, %cst_6 [0] : vector<8x32xf32> to vector<32xf32>
    %20 = vector.shape_cast %19 : vector<32xf32> to vector<1x32xf32>
    %cst_7 = arith.constant 8.000000e+00 : f32
    %21 = vector.broadcast %cst_7 : f32 to vector<1x32xf32>
    %22 = arith.divf %20, %21 : vector<1x32xf32>
    %23 = vector.broadcast %15 : vector<1x32xf32> to vector<8x32xf32>
    %24 = arith.subf %11, %23 : vector<8x32xf32>
    %cst_8 = arith.constant 9.99999974E-6 : f32
    %25 = vector.broadcast %cst_8 : f32 to vector<1x32xf32>
    %26 = arith.addf %22, %25 : vector<1x32xf32>
    %27 = math.rsqrt %26 : vector<1x32xf32>
    %28 = vector.broadcast %27 : vector<1x32xf32> to vector<8x32xf32>
    %29 = arith.mulf %24, %28 : vector<8x32xf32>
    %30 = vector.broadcast %1 : vector<1x32xf32> to vector<8x32xf32>
    %31 = arith.mulf %29, %30 : vector<8x32xf32>
    %32 = vector.broadcast %2 : vector<1x32xf32> to vector<8x32xf32>
    %33 = arith.addf %31, %32 : vector<8x32xf32>
    %c0_9 = arith.constant 0 : index
    %c0_10 = arith.constant 0 : index
    %34 = vector.load %arg1[%c0_9, %c0_10] : memref<32x32xf32, #tpu.memory_space<vmem>>, vector<32x32xf32>
    %cst_11 = arith.constant dense<0.000000e+00> : vector<32xf32>
    %35 = vector.multi_reduction <add>, %34, %cst_11 [0] : vector<32x32xf32> to vector<32xf32>
    %36 = vector.shape_cast %35 : vector<32xf32> to vector<1x32xf32>
    %cst_12 = arith.constant 3.200000e+01 : f32
    %37 = vector.broadcast %cst_12 : f32 to vector<1x32xf32>
    %38 = arith.divf %36, %37 : vector<1x32xf32>
    %39 = vector.broadcast %38 : vector<1x32xf32> to vector<32x32xf32>
    %40 = arith.subf %34, %39 : vector<32x32xf32>
    %41 = arith.mulf %40, %40 : vector<32x32xf32>
    %cst_13 = arith.constant dense<0.000000e+00> : vector<32xf32>
    %42 = vector.multi_reduction <add>, %41, %cst_13 [0] : vector<32x32xf32> to vector<32xf32>
    %43 = vector.shape_cast %42 : vector<32xf32> to vector<1x32xf32>
    %cst_14 = arith.constant 3.200000e+01 : f32
    %44 = vector.broadcast %cst_14 : f32 to vector<1x32xf32>
    %45 = arith.divf %43, %44 : vector<1x32xf32>
    %46 = vector.broadcast %38 : vector<1x32xf32> to vector<32x32xf32>
    %47 = arith.subf %34, %46 : vector<32x32xf32>
    %cst_15 = arith.constant 9.99999974E-6 : f32
    %48 = vector.broadcast %cst_15 : f32 to vector<1x32xf32>
    %49 = arith.addf %45, %48 : vector<1x32xf32>
    %50 = math.rsqrt %49 : vector<1x32xf32>
    %51 = vector.broadcast %50 : vector<1x32xf32> to vector<32x32xf32>
    %52 = arith.mulf %47, %51 : vector<32x32xf32>
    %53 = vector.broadcast %3 : vector<1x32xf32> to vector<32x32xf32>
    %54 = arith.mulf %52, %53 : vector<32x32xf32>
    %55 = vector.broadcast %4 : vector<1x32xf32> to vector<32x32xf32>
    %56 = arith.addf %54, %55 : vector<32x32xf32>
    %c0_16 = arith.constant 0 : index
    %c0_17 = arith.constant 0 : index
    %57 = vector.load %arg2[%c0_16, %c0_17] : memref<32x64xf32, #tpu.memory_space<vmem>>, vector<32x64xf32>
    %cst_18 = arith.constant dense<0.000000e+00> : vector<8x64xf32>
    %58 = tpu.matmul %33, %57, %cst_18 {dimension_numbers = #tpu.dot_dimension_numbers<[1], [0], [0], [1], [0, 0, 1, 1], [], []>} : vector<8x32xf32>, vector<32x64xf32>, vector<8x64xf32> -> vector<8x64xf32>
    %cst_19 = arith.constant 2.500000e-01 : f32
    %59 = vector.broadcast %cst_19 : f32 to vector<8x64xf32>
    %60 = arith.mulf %58, %59 : vector<8x64xf32>
    %c0_20 = arith.constant 0 : index
    %c0_21 = arith.constant 0 : index
    %61 = vector.load %arg3[%c0_20, %c0_21] : memref<32x128xf32, #tpu.memory_space<vmem>>, vector<32x128xf32>
    %cst_22 = arith.constant dense<0.000000e+00> : vector<32x128xf32>
    %62 = tpu.matmul %56, %61, %cst_22 {dimension_numbers = #tpu.dot_dimension_numbers<[1], [0], [0], [1], [0, 0, 1, 1], [], []>} : vector<32x32xf32>, vector<32x128xf32>, vector<32x128xf32> -> vector<32x128xf32>
    %63 = vector.extract_strided_slice %62 {offsets = [0, 0], sizes = [32, 64], strides = [1, 1]} : vector<32x128xf32> to vector<32x64xf32>
    %64 = vector.shape_cast %63 : vector<32x64xf32> to vector<2x16x64xf32>
    %65 = vector.extract_strided_slice %62 {offsets = [0, 64], sizes = [32, 64], strides = [1, 1]} : vector<32x128xf32> to vector<32x64xf32>
    %66 = vector.shape_cast %65 : vector<32x64xf32> to vector<2x16x64xf32>
    %67 = vector.shape_cast %60 : vector<8x64xf32> to vector<1x8x64xf32>
    %68 = vector.shape_cast %67 : vector<1x8x64xf32> to vector<1x8x64xf32>
    %69 = vector.broadcast %68 : vector<1x8x64xf32> to vector<4x8x64xf32>
    %70 = vector.shape_cast %69 : vector<4x8x64xf32> to vector<32x64xf32>
    %71 = arith.mulf %70, %10 : vector<32x64xf32>
    %72 = vector.shape_cast %71 : vector<32x64xf32> to vector<1x32x64xf32>
    %73 = vector.shape_cast %72 : vector<1x32x64xf32> to vector<1x32x64xf32>
    %74 = vector.broadcast %73 : vector<1x32x64xf32> to vector<2x32x64xf32>
    "tpu.trace_start"() <{level = 10 : i32, message = "bmk,bnk->bmn"}> : () -> ()
    %cst_23 = arith.constant dense<0.000000e+00> : vector<2x32x16xf32>
    %75 = tpu.matmul %74, %64, %cst_23 {dimension_numbers = #tpu.dot_dimension_numbers<[2], [2], [1], [1], [0, 0, 0, 1, 1, 1], [0], [0]>} : vector<2x32x64xf32>, vector<2x16x64xf32>, vector<2x32x16xf32> -> vector<2x32x16xf32>
    "tpu.trace_stop"() : () -> ()
    %cst_24 = arith.constant dense<0xFF800000> : vector<2x32xf32>
    %76 = vector.multi_reduction <maximumf>, %75, %cst_24 [2] : vector<2x32x16xf32> to vector<2x32xf32>
    %77 = vector.shape_cast %76 : vector<2x32xf32> to vector<2x32x1xf32>
    %78 = vector.broadcast %77 : vector<2x32x1xf32> to vector<2x32x16xf32>
    %79 = arith.subf %75, %78 : vector<2x32x16xf32>
    %80 = math.exp %79 : vector<2x32x16xf32>
    %cst_25 = arith.constant dense<0.000000e+00> : vector<2x32xf32>
    %81 = vector.multi_reduction <add>, %80, %cst_25 [2] : vector<2x32x16xf32> to vector<2x32xf32>
    %82 = vector.shape_cast %81 : vector<2x32xf32> to vector<2x32x1xf32>
    %83 = vector.broadcast %82 : vector<2x32x1xf32> to vector<2x32x16xf32>
    %84 = arith.divf %80, %83 : vector<2x32x16xf32>
    %85 = vector.shape_cast %84 : vector<2x32x16xf32> to vector<64x16xf32>
    %c0_26 = arith.constant 0 : index
    %c0_27 = arith.constant 0 : index
    %86 = vector.load %arg10[%c0_26, %c0_27] : memref<64x16xf32, #tpu.memory_space<vmem>>, vector<64x16xf32>
    tpu.vector_store %arg10[%c0_26, %c0_27], %85 {strides = array<i32>} : memref<64x16xf32, #tpu.memory_space<vmem>>, vector<64x16xf32>,
    "tpu.trace_start"() <{level = 10 : i32, message = "bmn,bnk->bmk"}> : () -> ()
    %cst_28 = arith.constant dense<0.000000e+00> : vector<2x32x64xf32>
    %87 = tpu.matmul %84, %66, %cst_28 {dimension_numbers = #tpu.dot_dimension_numbers<[2], [1], [1], [2], [0, 0, 0, 1, 1, 2], [0], [0]>} : vector<2x32x16xf32>, vector<2x16x64xf32>, vector<2x32x64xf32> -> vector<2x32x64xf32>
    "tpu.trace_stop"() : () -> ()
    %88 = vector.shape_cast %10 : vector<32x64xf32> to vector<1x32x64xf32>
    %89 = vector.broadcast %88 : vector<1x32x64xf32> to vector<2x32x64xf32>
    %90 = arith.mulf %87, %89 : vector<2x32x64xf32>
    %91 = vector.shape_cast %90 : vector<2x32x64xf32> to vector<64x64xf32>
    %c0_29 = arith.constant 0 : index
    %c0_30 = arith.constant 0 : index
    %92 = vector.load %arg4[%c0_29, %c0_30] : memref<64x32xf32, #tpu.memory_space<vmem>>, vector<64x32xf32>
    %cst_31 = arith.constant dense<0.000000e+00> : vector<64x32xf32>
    %93 = tpu.matmul %91, %92, %cst_31 {dimension_numbers = #tpu.dot_dimension_numbers<[1], [0], [0], [1], [0, 0, 1, 1], [], []>} : vector<64x64xf32>, vector<64x32xf32>, vector<64x32xf32> -> vector<64x32xf32>
    %94 = vector.shape_cast %93 : vector<64x32xf32> to vector<2x4x8x32xf32>
    %95 = vector.extract_strided_slice %94 {offsets = [0, 0, 0, 0], sizes = [2, 1, 8, 32], strides = [1, 1, 1, 1]} : vector<2x4x8x32xf32> to vector<2x1x8x32xf32>
    %96 = vector.shape_cast %95 : vector<2x1x8x32xf32> to vector<2x8x32xf32>
    %97 = vector.extract_strided_slice %94 {offsets = [0, 1, 0, 0], sizes = [2, 1, 8, 32], strides = [1, 1, 1, 1]} : vector<2x4x8x32xf32> to vector<2x1x8x32xf32>
    %98 = vector.shape_cast %97 : vector<2x1x8x32xf32> to vector<2x8x32xf32>
    %99 = arith.addf %96, %98 : vector<2x8x32xf32>
    %100 = vector.extract_strided_slice %94 {offsets = [0, 2, 0, 0], sizes = [2, 1, 8, 32], strides = [1, 1, 1, 1]} : vector<2x4x8x32xf32> to vector<2x1x8x32xf32>
    %101 = vector.shape_cast %100 : vector<2x1x8x32xf32> to vector<2x8x32xf32>
    %102 = arith.addf %99, %101 : vector<2x8x32xf32>
    %103 = vector.extract_strided_slice %94 {offsets = [0, 3, 0, 0], sizes = [2, 1, 8, 32], strides = [1, 1, 1, 1]} : vector<2x4x8x32xf32> to vector<2x1x8x32xf32>
    %104 = vector.shape_cast %103 : vector<2x1x8x32xf32> to vector<2x8x32xf32>
    %105 = arith.addf %102, %104 : vector<2x8x32xf32>
    %106 = vector.shape_cast %105 : vector<2x8x32xf32> to vector<16x32xf32>
    %107 = vector.broadcast %5 : vector<1x32xf32> to vector<16x32xf32>
    %108 = arith.addf %106, %107 : vector<16x32xf32>
    %cst_32 = arith.constant dense<0.000000e+00> : vector<32xf32>
    %109 = vector.multi_reduction <add>, %108, %cst_32 [0] : vector<16x32xf32> to vector<32xf32>
    %110 = vector.shape_cast %109 : vector<32xf32> to vector<1x32xf32>
    %cst_33 = arith.constant 1.600000e+01 : f32
    %111 = vector.broadcast %cst_33 : f32 to vector<1x32xf32>
    %112 = arith.divf %110, %111 : vector<1x32xf32>
    %113 = vector.broadcast %112 : vector<1x32xf32> to vector<16x32xf32>
    %114 = arith.subf %108, %113 : vector<16x32xf32>
    %115 = arith.mulf %114, %114 : vector<16x32xf32>
    %cst_34 = arith.constant dense<0.000000e+00> : vector<32xf32>
    %116 = vector.multi_reduction <add>, %115, %cst_34 [0] : vector<16x32xf32> to vector<32xf32>
    %117 = vector.shape_cast %116 : vector<32xf32> to vector<1x32xf32>
    %cst_35 = arith.constant 1.600000e+01 : f32
    %118 = vector.broadcast %cst_35 : f32 to vector<1x32xf32>
    %119 = arith.divf %117, %118 : vector<1x32xf32>
    %120 = vector.broadcast %112 : vector<1x32xf32> to vector<16x32xf32>
    %121 = arith.subf %108, %120 : vector<16x32xf32>
    %cst_36 = arith.constant 9.99999974E-6 : f32
    %122 = vector.broadcast %cst_36 : f32 to vector<1x32xf32>
    %123 = arith.addf %119, %122 : vector<1x32xf32>
    %124 = math.rsqrt %123 : vector<1x32xf32>
    %125 = vector.broadcast %124 : vector<1x32xf32> to vector<16x32xf32>
    %126 = arith.mulf %121, %125 : vector<16x32xf32>
    %c0_37 = arith.constant 0 : index
    %c0_38 = arith.constant 0 : index
    %127 = vector.load %arg5[%c0_37, %c0_38] : memref<32x128xf32, #tpu.memory_space<vmem>>, vector<32x128xf32>
    %cst_39 = arith.constant dense<0.000000e+00> : vector<16x128xf32>
    %128 = tpu.matmul %126, %127, %cst_39 {dimension_numbers = #tpu.dot_dimension_numbers<[1], [0], [0], [1], [0, 0, 1, 1], [], []>} : vector<16x32xf32>, vector<32x128xf32>, vector<16x128xf32> -> vector<16x128xf32>
    %129 = vector.broadcast %7 : vector<1x128xf32> to vector<16x128xf32>
    %130 = arith.addf %128, %129 : vector<16x128xf32>
    %cst_40 = arith.constant dense<0.000000e+00> : vector<128xf32>
    %131 = vector.multi_reduction <add>, %130, %cst_40 [0] : vector<16x128xf32> to vector<128xf32>
    %132 = vector.shape_cast %131 : vector<128xf32> to vector<1x128xf32>
    %cst_41 = arith.constant 1.600000e+01 : f32
    %133 = vector.broadcast %cst_41 : f32 to vector<1x128xf32>
    %134 = arith.divf %132, %133 : vector<1x128xf32>
    %135 = vector.broadcast %134 : vector<1x128xf32> to vector<16x128xf32>
    %136 = arith.subf %130, %135 : vector<16x128xf32>
    %137 = arith.mulf %136, %136 : vector<16x128xf32>
    %cst_42 = arith.constant dense<0.000000e+00> : vector<128xf32>
    %138 = vector.multi_reduction <add>, %137, %cst_42 [0] : vector<16x128xf32> to vector<128xf32>
    %139 = vector.shape_cast %138 : vector<128xf32> to vector<1x128xf32>
    %cst_43 = arith.constant 1.600000e+01 : f32
    %140 = vector.broadcast %cst_43 : f32 to vector<1x128xf32>
    %141 = arith.divf %139, %140 : vector<1x128xf32>
    %142 = vector.broadcast %134 : vector<1x128xf32> to vector<16x128xf32>
    %143 = arith.subf %130, %142 : vector<16x128xf32>
    %cst_44 = arith.constant 9.99999974E-6 : f32
    %144 = vector.broadcast %cst_44 : f32 to vector<1x128xf32>
    %145 = arith.addf %141, %144 : vector<1x128xf32>
    %146 = math.rsqrt %145 : vector<1x128xf32>
    %147 = vector.broadcast %146 : vector<1x128xf32> to vector<16x128xf32>
    %148 = arith.mulf %143, %147 : vector<16x128xf32>
    %149 = vector.broadcast %8 : vector<1x128xf32> to vector<16x128xf32>
    %150 = arith.mulf %148, %149 : vector<16x128xf32>
    %151 = vector.broadcast %9 : vector<1x128xf32> to vector<16x128xf32>
    %152 = arith.addf %150, %151 : vector<16x128xf32>
    %cst_45 = arith.constant 1.702000e+00 : f32
    %153 = vector.broadcast %cst_45 : f32 to vector<16x128xf32>
    %154 = arith.mulf %153, %152 : vector<16x128xf32>
    %155 = arith.negf %154 : vector<16x128xf32>
    %156 = math.exp %155 : vector<16x128xf32>
    %cst_46 = arith.constant 1.000000e+00 : f32
    %157 = vector.broadcast %cst_46 : f32 to vector<16x128xf32>
    %158 = arith.addf %157, %156 : vector<16x128xf32>
    %159 = arith.divf %157, %158 : vector<16x128xf32>
    %160 = arith.mulf %152, %159 : vector<16x128xf32>
    %c0_47 = arith.constant 0 : index
    %c0_48 = arith.constant 0 : index
    %161 = vector.load %arg6[%c0_47, %c0_48] : memref<128x32xf32, #tpu.memory_space<vmem>>, vector<128x32xf32>
    %cst_49 = arith.constant dense<0.000000e+00> : vector<16x32xf32>
    %162 = tpu.matmul %160, %161, %cst_49 {dimension_numbers = #tpu.dot_dimension_numbers<[1], [0], [0], [1], [0, 0, 1, 1], [], []>} : vector<16x128xf32>, vector<128x32xf32>, vector<16x32xf32> -> vector<16x32xf32>
    %163 = vector.broadcast %6 : vector<1x32xf32> to vector<16x32xf32>
    %164 = arith.addf %162, %163 : vector<16x32xf32>
    %c0_50 = arith.constant 0 : index
    %c0_51 = arith.constant 0 : index
    %165 = vector.load %arg9[%c0_50, %c0_51] : memref<16x32xf32, #tpu.memory_space<vmem>>, vector<16x32xf32>
    tpu.vector_store %arg9[%c0_50, %c0_51], %164 {strides = array<i32>} : memref<16x32xf32, #tpu.memory_space<vmem>>, vector<16x32xf32>,
    return
  }
}

</mosaic_0001>

<llo_original>
// kernel: cross_attention_block.1
$region0: #{cross_attention_block.1}
  #allocation0 [shape = 'u32[]', space=smem, size = 0x4, offset = 0x4, fixed_abs, tag = 'smem constant byte address 0x4 - core index']
  #allocation1 [shape = 'u32[144,128]{1,0:T(1,128)}', space=vmem, size = 0x12000, scoped, tag = 'internal scratch']
  %s0 = inlined_call_operand.vmem [shape: f32[8,32], index: 0, kind: input, shape index: {}]
  %s1 = inlined_call_operand.vmem [shape: f32[32,32], index: 1, kind: input, shape index: {}]
  %s2 = inlined_call_operand.vmem [shape: f32[32,64], index: 2, kind: input, shape index: {}]
  %s3 = inlined_call_operand.vmem [shape: f32[32,128], index: 3, kind: input, shape index: {}]
  %s4 = inlined_call_operand.vmem [shape: f32[64,32], index: 4, kind: input, shape index: {}]
  %s5 = inlined_call_operand.vmem [shape: f32[32,128], index: 5, kind: input, shape index: {}]
  %s6 = inlined_call_operand.vmem [shape: f32[128,32], index: 6, kind: input, shape index: {}]
  %s7 = inlined_call_operand.vmem [shape: f32[9,128], index: 7, kind: input, shape index: {}]
  %s8 = inlined_call_operand.vmem [shape: f32[32,64], index: 8, kind: input, shape index: {}]
  %s9 = inlined_call_operand.hbm [shape: f32[16,32], index: 9, kind: output, shape index: {0}]
  %s10 = inlined_call_operand.hbm [shape: f32[64,16], index: 10, kind: output, shape index: {1}]
  %11 = xla_tuple %s9, %s10
  %s12 = sld [smem:[#allocation0]]
  $region54: #{cross_attention_block.1} parent=0
    _
  %s14 = ssub.s32 1, %s12
  %s15 = scalar_select 0, %s14, %s12
  $region1: #{cross_attention_block.1} parent=0
    #allocation2 [shape = 'u8[8192]{0}', space=vmem, size = 0x2000, scoped, tag = 'output window, operand 0, single buffered']
    #allocation3 [shape = 's32[1]{0}', space=sflag, size = 0x4, scoped, tag = 'scoped memory for cross_attention_block.1']
    #allocation4 [shape = 'u8[32768]{0}', space=vmem, size = 0x8000, scoped, tag = 'output window, operand 1, single buffered']
    #allocation5 [shape = 's32[1]{0}', space=sflag, size = 0x4, scoped, tag = 'scoped memory for cross_attention_block.1']
    %16 = vsyncpa [#allocation3], 0
    %17 = vsyncpa [#allocation5], 0
    // Predicated region
    $region2: #{cross_attention_block.1} parent=1 // pred_check
      _
    $region3: #{cross_attention_block.1} parent=1 // pred_check_branch
      %19 = sbr.rel (0) target = $region5
    $region4: #{cross_attention_block.1} parent=1 // pred_region
      _
    $region5: #{cross_attention_block.1} parent=1 // pred_fallthru
      _
    // Predicated region
    $region6: #{cross_attention_block.1} parent=1 // pred_check
      _
    $region7: #{cross_attention_block.1} parent=1 // pred_check_branch
      %21 = sbr.rel (0) target = $region9
    $region8: #{cross_attention_block.1} parent=1 // pred_region
      _
    $region9: #{cross_attention_block.1} parent=1 // pred_fallthru
      _
    // Predicated region
    $region10: #{cross_attention_block.1} parent=1 // pred_check
      _
    $region11: #{cross_attention_block.1} parent=1 // pred_check_branch
      %23 = sbr.rel (0) target = $region13
    $region12: #{cross_attention_block.1} parent=1 // pred_region
      _
    $region13: #{cross_attention_block.1} parent=1 // pred_fallthru
      _
    // Predicated region
    $region14: #{cross_attention_block.1} parent=1 // pred_check
      _
    $region15: #{cross_attention_block.1} parent=1 // pred_check_branch
      %25 = sbr.rel (0) target = $region17
    $region16: #{cross_attention_block.1} parent=1 // pred_region
      _
    $region17: #{cross_attention_block.1} parent=1 // pred_fallthru
      _
    // Predicated region
    $region18: #{cross_attention_block.1} parent=1 // pred_check
      _
    $region19: #{cross_attention_block.1} parent=1 // pred_check_branch
      %27 = sbr.rel (0) target = $region21
    $region20: #{cross_attention_block.1} parent=1 // pred_region
      _
    $region21: #{cross_attention_block.1} parent=1 // pred_fallthru
      _
    // Predicated region
    $region22: #{cross_attention_block.1} parent=1 // pred_check
      _
    $region23: #{cross_attention_block.1} parent=1 // pred_check_branch
      %29 = sbr.rel (0) target = $region25
    $region24: #{cross_attention_block.1} parent=1 // pred_region
      _
    $region25: #{cross_attention_block.1} parent=1 // pred_fallthru
      _
    // Predicated region
    $region26: #{cross_attention_block.1} parent=1 // pred_check
      _
    $region27: #{cross_attention_block.1} parent=1 // pred_check_branch
      %31 = sbr.rel (0) target = $region29
    $region28: #{cross_attention_block.1} parent=1 // pred_region
      _
    $region29: #{cross_attention_block.1} parent=1 // pred_fallthru
      _
    // Predicated region
    $region30: #{cross_attention_block.1} parent=1 // pred_check
      _
    $region31: #{cross_attention_block.1} parent=1 // pred_check_branch
      %33 = sbr.rel (0) target = $region33
    $region32: #{cross_attention_block.1} parent=1 // pred_region
      _
    $region33: #{cross_attention_block.1} parent=1 // pred_fallthru
      _
    // Predicated region
    $region34: #{cross_attention_block.1} parent=1 // pred_check
      _
    $region35: #{cross_attention_block.1} parent=1 // pred_check_branch
      %35 = sbr.rel (0) target = $region37
    $region36: #{cross_attention_block.1} parent=1 // pred_region
      _
    $region37: #{cross_attention_block.1} parent=1 // pred_fallthru
      _
    %v36 = vld [vmem:[%s7] sm:$0xff]
    %v37 = vld [vmem:[%s7 + $0x8] sm:$0x1]
    %v38 = vld [vmem:[%s8] sm:$0xff]
    %v39 = vld [vmem:[%s8 + $0x8] sm:$0xff]
    %v40 = vld [vmem:[%s8 + $0x10] sm:$0xff]
    %v41 = vld [vmem:[%s8 + $0x18] sm:$0xff]
    %v42 = vld [vmem:[%s0] sm:$0xff]
    %vm43 = vcmask 261120
    %v44 = vsel %vm43, %v42, 0.0
    %v45 = vrot.slane %v44, 4
    %v46 = vadd.f32 %v44, %v45
    %v47 = vrot.slane %v46, 2
    %v48 = vadd.f32 %v46, %v47
    %v49 = vrot.slane %v48, 1
    %v50 = vadd.f32 %v48, %v49
    %v51 = vrcp.pop 8.0
    %v52 = vmul.f32 %v50, %v51
    %v53 = vsub.f32 %v42, %v52
    %v54 = vmul.f32 %v53, %v53
    %v55 = vsel %vm43, %v54, 0.0
    %v56 = vrot.slane %v55, 4
    %v57 = vadd.f32 %v55, %v56
    %v58 = vrot.slane %v57, 2
    %v59 = vadd.f32 %v57, %v58
    %v60 = vrot.slane %v59, 1
    %v61 = vadd.f32 %v59, %v60
    %v62 = vmul.f32 %v61, %v51
    %v63 = vadd.f32 %v62, 1e-05
    %v64 = vrsqrt.pop %v63
    %v65 = vmul.f32 %v53, %v64
    %v66 = vlaneseq
    %v67 = vshrl.u32 %v66, 7
    %v68 = vsub.s32 0, %v67
    %v69 = vrot.slane %v36, %v68
    %v70 = vmul.f32 %v65, %v69
    %v71 = vlaneseq
    %v72 = vshrl.u32 %v71, 7
    %v73 = vsub.s32 1, %v72
    %v74 = vrot.slane %v36, %v73
    %v75 = vadd.f32 %v70, %v74
    %v76 = vld [vmem:[%s1] sm:$0xff]
    %v77 = vld [vmem:[%s1 + $0x8] sm:$0xff]
    %v78 = vld [vmem:[%s1 + $0x10] sm:$0xff]
    %v79 = vld [vmem:[%s1 + $0x18] sm:$0xff]
    %v80 = vsel %vm43, %v76, 0.0
    %v81 = vsel %vm43, %v77, 0.0
    %v82 = vadd.f32 %v80, %v81
    %v83 = vsel %vm43, %v78, 0.0
    %v84 = vadd.f32 %v82, %v83
    %v85 = vsel %vm43, %v79, 0.0
    %v86 = vadd.f32 %v84, %v85
    %v87 = vrot.slane %v86, 4
    %v88 = vadd.f32 %v86, %v87
    %v89 = vrot.slane %v88, 2
    %v90 = vadd.f32 %v88, %v89
    %v91 = vrot.slane %v90, 1
    %v92 = vadd.f32 %v90, %v91
    %v93 = vrcp.pop 32.0
    %v94 = vmul.f32 %v92, %v93
    %v95 = vsub.f32 %v76, %v94
    %v96 = vsub.f32 %v77, %v94
    %v97 = vsub.f32 %v78, %v94
    %v98 = vsub.f32 %v79, %v94
    %v99 = vmul.f32 %v95, %v95
    %v100 = vmul.f32 %v96, %v96
    %v101 = vmul.f32 %v97, %v97
    %v102 = vmul.f32 %v98, %v98
    %v103 = vsel %vm43, %v99, 0.0
    %v104 = vsel %vm43, %v100, 0.0
    %v105 = vadd.f32 %v103, %v104
    %v106 = vsel %vm43, %v101, 0.0
    %v107 = vadd.f32 %v105, %v106
    %v108 = vsel %vm43, %v102, 0.0
    %v109 = vadd.f32 %v107, %v108
    %v110 = vrot.slane %v109, 4
    %v111 = vadd.f32 %v109, %v110
    %v112 = vrot.slane %v111, 2
    %v113 = vadd.f32 %v111, %v112
    %v114 = vrot.slane %v113, 1
    %v115 = vadd.f32 %v113, %v114
    %v116 = vmul.f32 %v115, %v93
    %v117 = vadd.f32 %v116, 1e-05
    %v118 = vrsqrt.pop %v117
    %v119 = vmul.f32 %v95, %v118
    %v120 = vmul.f32 %v96, %v118
    %v121 = vmul.f32 %v97, %v118
    %v122 = vmul.f32 %v98, %v118
    %v123 = vlaneseq
    %v124 = vshrl.u32 %v123, 7
    %v125 = vsub.s32 2, %v124
    %v126 = vrot.slane %v36, %v125
    %v127 = vmul.f32 %v119, %v126
    %v128 = vmul.f32 %v120, %v126
    %v129 = vmul.f32 %v121, %v126
    %v130 = vmul.f32 %v122, %v126
    %v131 = vlaneseq
    %v132 = vshrl.u32 %v131, 7
    %v133 = vsub.s32 3, %v132
    %v134 = vrot.slane %v36, %v133
    %v135 = vadd.f32 %v127, %v134
    %v136 = vadd.f32 %v128, %v134
    %v137 = vadd.f32 %v129, %v134
    %v138 = vadd.f32 %v130, %v134
    %v139 = vld [vmem:[%s2] sm:$0xff]
    %v140 = vld [vmem:[%s2 + $0x8] sm:$0xff]
    %v141 = vld [vmem:[%s2 + $0x10] sm:$0xff]
    %v142 = vld [vmem:[%s2 + $0x18] sm:$0xff]
    %v144 = vsel %vm43, %v75, 0
    %146 = vmatprep.subr.mxu0 0.0
    %147 = vmatpush1.msra.mxu0 %v139
    %148 = vmatprep.subr.mxu0 0.0
    %149 = vmatpush1.msra.mxu0 %v140
    %150 = vmatprep.subr.mxu0 0.0
    %151 = vmatpush1.msra.mxu0 %v141
    %152 = vmatprep.subr.mxu0 0.0
    %153 = vmatpush1.msra.mxu0 %v142
    %154 = vmatprep.subr.mxu0 0.0
    %155 = vmatpush1.msra.mxu0 0.0
    %156 = vmatprep.subr.mxu0 0.0
    %157 = vmatpush1.msra.mxu0 0.0
    %158 = vmatprep.subr.mxu0 0.0
    %159 = vmatpush1.msra.mxu0 0.0
    %160 = vmatprep.subr.mxu0 0.0
    %161 = vmatpush1.msra.mxu0 0.0
    %162 = vmatprep.subr.mxu0 0.0
    %163 = vmatpush1.msra.mxu0 0.0
    %164 = vmatprep.subr.mxu0 0.0
    %165 = vmatpush1.msra.mxu0 0.0
    %166 = vmatprep.subr.mxu0 0.0
    %167 = vmatpush1.msra.mxu0 0.0
    %168 = vmatprep.subr.mxu0 0.0
    %169 = vmatpush1.msra.mxu0 0.0
    %170 = vmatprep.subr.mxu0 0.0
    %171 = vmatpush1.msra.mxu0 0.0
    %172 = vmatprep.subr.mxu0 0.0
    %173 = vmatpush1.msra.mxu0 0.0
    %174 = vmatprep.subr.mxu0 0.0
    %175 = vmatpush1.msra.mxu0 0.0
    %176 = vmatprep.subr.mxu0 0.0
    %177 = vmatpush1.msra.mxu0 0.0
    %178 = vmatprep.subr.mxu0 0.0
    %179 = vmatpush1.msra.mxu0 0.0
    %180 = vmatprep.subr.mxu0 0.0
    %181 = vmatpush1.msra.mxu0 0.0
    %182 = vmatprep.subr.mxu0 0.0
    %183 = vmatpush1.msra.mxu0 0.0
    %184 = vmatprep.subr.mxu0 0.0
    %185 = vmatpush1.msra.mxu0 0.0
    %186 = vmatprep.subr.mxu0 0.0
    %187 = vmatpush1.msra.mxu0 0.0
    %188 = vmatprep.subr.mxu0 0.0
    %189 = vmatpush1.msra.mxu0 0.0
    %190 = vmatprep.subr.mxu0 0.0
    %191 = vmatpush1.msra.mxu0 0.0
    %192 = vmatprep.subr.mxu0 0.0
    %193 = vmatpush1.msra.mxu0 0.0
    %194 = vmatprep.subr.mxu0 0.0
    %195 = vmatpush1.msra.mxu0 0.0
    %196 = vmatprep.subr.mxu0 0.0
    %197 = vmatpush1.msra.mxu0 0.0
    %198 = vmatprep.subr.mxu0 0.0
    %199 = vmatpush1.msra.mxu0 0.0
    %200 = vmatprep.subr.mxu0 0.0
    %201 = vmatpush1.msra.mxu0 0.0
    %202 = vmatprep.subr.mxu0 0.0
    %203 = vmatpush1.msra.mxu0 0.0
    %204 = vmatprep.subr.mxu0 0.0
    %205 = vmatpush1.msra.mxu0 0.0
    %206 = vmatprep.subr.mxu0 0.0
    %207 = vmatpush1.msra.mxu0 0.0
    %208 = vmatprep.subr.mxu0 0.0
    %209 = vmatpush1.msra.mxu0 0.0
    %210 = vmatprep.mubr.f32.mxu0 0.0
    %211 = vmatmul.mubr.f32.gmra.mrb[0].mxu0 %v144
    %v212 = vpop.f32.mrb[0].mxu0
    %v213 = vadd.f32 0.0, %v212
    %v214 = vpop.f32.mrb[0].mxu0
    %215 = vdwg.mxu0
    %v216 = vmul.f32 %v213, 0.25
    %v217 = vld [vmem:[%s3] sm:$0xff]
    %v218 = vld [vmem:[%s3 + $0x8] sm:$0xff]
    %v219 = vld [vmem:[%s3 + $0x10] sm:$0xff]
    %v220 = vld [vmem:[%s3 + $0x18] sm:$0xff]
    %v222 = vsel %vm43, %v135, 0
    %v225 = vsel %vm43, %v136, 0
    %v228 = vsel %vm43, %v137, 0
    %v231 = vsel %vm43, %v138, 0
    %233 = vmatprep.subr.mxu0 0.0
    %234 = vmatpush1.msra.mxu0 %v217
    %235 = vmatprep.subr.mxu0 0.0
    %236 = vmatpush1.msra.mxu0 %v218
    %237 = vmatprep.subr.mxu0 0.0
    %238 = vmatpush1.msra.mxu0 %v219
    %239 = vmatprep.subr.mxu0 0.0
    %240 = vmatpush1.msra.mxu0 %v220
    %241 = vmatprep.subr.mxu0 0.0
    %242 = vmatpush1.msra.mxu0 0.0
    %243 = vmatprep.subr.mxu0 0.0
    %244 = vmatpush1.msra.mxu0 0.0
    %245 = vmatprep.subr.mxu0 0.0
    %246 = vmatpush1.msra.mxu0 0.0
    %247 = vmatprep.subr.mxu0 0.0
    %248 = vmatpush1.msra.mxu0 0.0
    %249 = vmatprep.subr.mxu0 0.0
    %250 = vmatpush1.msra.mxu0 0.0
    %251 = vmatprep.subr.mxu0 0.0
    %252 = vmatpush1.msra.mxu0 0.0
    %253 = vmatprep.subr.mxu0 0.0
    %254 = vmatpush1.msra.mxu0 0.0
    %255 = vmatprep.subr.mxu0 0.0
    %256 = vmatpush1.msra.mxu0 0.0
    %257 = vmatprep.subr.mxu0 0.0
    %258 = vmatpush1.msra.mxu0 0.0
    %259 = vmatprep.subr.mxu0 0.0
    %260 = vmatpush1.msra.mxu0 0.0
    %261 = vmatprep.subr.mxu0 0.0
    %262 = vmatpush1.msra.mxu0 0.0
    %263 = vmatprep.subr.mxu0 0.0
    %264 = vmatpush1.msra.mxu0 0.0
    %265 = vmatprep.subr.mxu0 0.0
    %266 = vmatpush1.msra.mxu0 0.0
    %267 = vmatprep.subr.mxu0 0.0
    %268 = vmatpush1.msra.mxu0 0.0
    %269 = vmatprep.subr.mxu0 0.0
    %270 = vmatpush1.msra.mxu0 0.0
    %271 = vmatprep.subr.mxu0 0.0
    %272 = vmatpush1.msra.mxu0 0.0
    %273 = vmatprep.subr.mxu0 0.0
    %274 = vmatpush1.msra.mxu0 0.0
    %275 = vmatprep.subr.mxu0 0.0
    %276 = vmatpush1.msra.mxu0 0.0
    %277 = vmatprep.subr.mxu0 0.0
    %278 = vmatpush1.msra.mxu0 0.0
    %279 = vmatprep.subr.mxu0 0.0
    %280 = vmatpush1.msra.mxu0 0.0
    %281 = vmatprep.subr.mxu0 0.0
    %282 = vmatpush1.msra.mxu0 0.0
    %283 = vmatprep.subr.mxu0 0.0
    %284 = vmatpush1.msra.mxu0 0.0
    %285 = vmatprep.subr.mxu0 0.0
    %286 = vmatpush1.msra.mxu0 0.0
    %287 = vmatprep.subr.mxu0 0.0
    %288 = vmatpush1.msra.mxu0 0.0
    %289 = vmatprep.subr.mxu0 0.0
    %290 = vmatpush1.msra.mxu0 0.0
    %291 = vmatprep.subr.mxu0 0.0
    %292 = vmatpush1.msra.mxu0 0.0
    %293 = vmatprep.subr.mxu0 0.0
    %294 = vmatpush1.msra.mxu0 0.0
    %295 = vmatprep.subr.mxu0 0.0
    %296 = vmatpush1.msra.mxu0 0.0
    %297 = vmatprep.mubr.f32.mxu0 0.0
    %298 = vmatmul.mubr.f32.gmra.mrb[0].mxu0 %v222
    %v299 = vpop.f32.mrb[0].mxu0
    %v300 = vadd.f32 0.0, %v299
    %v301 = vpop.f32.mrb[0].mxu0
    %302 = vmatprep.mubr.f32.mxu0 0.0
    %303 = vmatmul.mubr.f32.gmra.mrb[0].mxu0 %v225
    %v304 = vpop.f32.mrb[0].mxu0
    %v305 = vadd.f32 0.0, %v304
    %v306 = vpop.f32.mrb[0].mxu0
    %307 = vmatprep.mubr.f32.mxu0 0.0
    %308 = vmatmul.mubr.f32.gmra.mrb[0].mxu0 %v228
    %v309 = vpop.f32.mrb[0].mxu0
    %v310 = vadd.f32 0.0, %v309
    %v311 = vpop.f32.mrb[0].mxu0
    %312 = vmatprep.mubr.f32.mxu0 0.0
    %313 = vmatmul.mubr.f32.gmra.mrb[0].mxu0 %v231
    %v314 = vpop.f32.mrb[0].mxu0
    %v315 = vadd.f32 0.0, %v314
    %v316 = vpop.f32.mrb[0].mxu0
    %317 = vdwg.mxu0
    %v318 = vmul.f32 %v216, %v38
    %v319 = vmul.f32 %v216, %v39
    %v320 = vmul.f32 %v216, %v40
    %v321 = vmul.f32 %v216, %v41
    %vm322 = vcmask 523264
    %v324 = vsel %vm322, %v318, 0
    %v327 = vsel %vm322, %v319, 0
    %v330 = vsel %vm322, %v320, 0
    %v333 = vsel %vm322, %v321, 0
    %v336 = vsel %vm322, %v300, 0
    %v339 = vsel %vm322, %v305, 0
    %341 = vmatprep.subr.mxu0 0.0
    %342 = vmatpush1.xpose.msra.mxu0 %v336
    %343 = vmatprep.subr.mxu0 0.0
    %344 = vmatpush1.xpose.msra.mxu0 %v339
    %345 = vmatprep.subr.mxu0 0.0
    %346 = vmatpush1.xpose.msra.mxu0 0.0
    %347 = vmatprep.subr.mxu0 0.0
    %348 = vmatpush1.xpose.msra.mxu0 0.0
    %349 = vmatprep.subr.mxu0 0.0
    %350 = vmatpush1.xpose.msra.mxu0 0.0
    %351 = vmatprep.subr.mxu0 0.0
    %352 = vmatpush1.xpose.msra.mxu0 0.0
    %353 = vmatprep.subr.mxu0 0.0
    %354 = vmatpush1.xpose.msra.mxu0 0.0
    %355 = vmatprep.subr.mxu0 0.0
    %356 = vmatpush1.xpose.msra.mxu0 0.0
    %357 = vmatprep.subr.mxu0 0.0
    %358 = vmatpush1.xpose.msra.mxu0 0.0
    %359 = vmatprep.subr.mxu0 0.0
    %360 = vmatpush1.xpose.msra.mxu0 0.0
    %361 = vmatprep.subr.mxu0 0.0
    %362 = vmatpush1.xpose.msra.mxu0 0.0
    %363 = vmatprep.subr.mxu0 0.0
    %364 = vmatpush1.xpose.msra.mxu0 0.0
    %365 = vmatprep.subr.mxu0 0.0
    %366 = vmatpush1.xpose.msra.mxu0 0.0
    %367 = vmatprep.subr.mxu0 0.0
    %368 = vmatpush1.xpose.msra.mxu0 0.0
    %369 = vmatprep.subr.mxu0 0.0
    %370 = vmatpush1.xpose.msra.mxu0 0.0
    %371 = vmatprep.subr.mxu0 0.0
    %372 = vmatpush1.xpose.msra.mxu0 0.0
    %373 = vmatprep.subr.mxu0 0.0
    %374 = vmatpush1.xpose.msra.mxu0 0.0
    %375 = vmatprep.subr.mxu0 0.0
    %376 = vmatpush1.xpose.msra.mxu0 0.0
    %377 = vmatprep.subr.mxu0 0.0
    %378 = vmatpush1.xpose.msra.mxu0 0.0
    %379 = vmatprep.subr.mxu0 0.0
    %380 = vmatpush1.xpose.msra.mxu0 0.0
    %381 = vmatprep.subr.mxu0 0.0
    %382 = vmatpush1.xpose.msra.mxu0 0.0
    %383 = vmatprep.subr.mxu0 0.0
    %384 = vmatpush1.xpose.msra.mxu0 0.0
    %385 = vmatprep.subr.mxu0 0.0
    %386 = vmatpush1.xpose.msra.mxu0 0.0
    %387 = vmatprep.subr.mxu0 0.0
    %388 = vmatpush1.xpose.msra.mxu0 0.0
    %389 = vmatprep.subr.mxu0 0.0
    %390 = vmatpush1.xpose.msra.mxu0 0.0
    %391 = vmatprep.subr.mxu0 0.0
    %392 = vmatpush1.xpose.msra.mxu0 0.0
    %393 = vmatprep.subr.mxu0 0.0
    %394 = vmatpush1.xpose.msra.mxu0 0.0
    %395 = vmatprep.subr.mxu0 0.0
    %396 = vmatpush1.xpose.msra.mxu0 0.0
    %397 = vmatprep.subr.mxu0 0.0
    %398 = vmatpush1.xpose.msra.mxu0 0.0
    %399 = vmatprep.subr.mxu0 0.0
    %400 = vmatpush1.xpose.msra.mxu0 0.0
    %401 = vmatprep.subr.mxu0 0.0
    %402 = vmatpush1.xpose.msra.mxu0 0.0
    %403 = vmatprep.subr.mxu0 0.0
    %404 = vmatpush1.xpose.msra.mxu0 0.0
    %405 = vmatprep.mubr.f32.mxu0 0.0
    %406 = vmatmul.mubr.f32.gmra.mrb[0].mxu0 %v324
    %v407 = vpop.f32.mrb[0].mxu0
    %v408 = vadd.f32 0.0, %v407
    %v409 = vpop.f32.mrb[0].mxu0
    %410 = vmatprep.mubr.f32.mxu0 0.0
    %411 = vmatmul.mubr.f32.gmra.mrb[0].mxu0 %v327
    %v412 = vpop.f32.mrb[0].mxu0
    %v413 = vadd.f32 0.0, %v412
    %v414 = vpop.f32.mrb[0].mxu0
    %415 = vmatprep.mubr.f32.mxu0 0.0
    %416 = vmatmul.mubr.f32.gmra.mrb[0].mxu0 %v330
    %v417 = vpop.f32.mrb[0].mxu0
    %v418 = vadd.f32 0.0, %v417
    %v419 = vpop.f32.mrb[0].mxu0
    %420 = vmatprep.mubr.f32.mxu0 0.0
    %421 = vmatmul.mubr.f32.gmra.mrb[0].mxu0 %v333
    %v422 = vpop.f32.mrb[0].mxu0
    %v423 = vadd.f32 0.0, %v422
    %v424 = vpop.f32.mrb[0].mxu0
    %425 = vdwg.mxu0
    %v427 = vsel %vm322, %v310, 0
    %v430 = vsel %vm322, %v315, 0
    %432 = vmatprep.subr.mxu0 0.0
    %433 = vmatpush1.xpose.msra.mxu0 %v427
    %434 = vmatprep.subr.mxu0 0.0
    %435 = vmatpush1.xpose.msra.mxu0 %v430
    %436 = vmatprep.subr.mxu0 0.0
    %437 = vmatpush1.xpose.msra.mxu0 0.0
    %438 = vmatprep.subr.mxu0 0.0
    %439 = vmatpush1.xpose.msra.mxu0 0.0
    %440 = vmatprep.subr.mxu0 0.0
    %441 = vmatpush1.xpose.msra.mxu0 0.0
    %442 = vmatprep.subr.mxu0 0.0
    %443 = vmatpush1.xpose.msra.mxu0 0.0
    %444 = vmatprep.subr.mxu0 0.0
    %445 = vmatpush1.xpose.msra.mxu0 0.0
    %446 = vmatprep.subr.mxu0 0.0
    %447 = vmatpush1.xpose.msra.mxu0 0.0
    %448 = vmatprep.subr.mxu0 0.0
    %449 = vmatpush1.xpose.msra.mxu0 0.0
    %450 = vmatprep.subr.mxu0 0.0
    %451 = vmatpush1.xpose.msra.mxu0 0.0
    %452 = vmatprep.subr.mxu0 0.0
    %453 = vmatpush1.xpose.msra.mxu0 0.0
    %454 = vmatprep.subr.mxu0 0.0
    %455 = vmatpush1.xpose.msra.mxu0 0.0
    %456 = vmatprep.subr.mxu0 0.0
    %457 = vmatpush1.xpose.msra.mxu0 0.0
    %458 = vmatprep.subr.mxu0 0.0
    %459 = vmatpush1.xpose.msra.mxu0 0.0
    %460 = vmatprep.subr.mxu0 0.0
    %461 = vmatpush1.xpose.msra.mxu0 0.0
    %462 = vmatprep.subr.mxu0 0.0
    %463 = vmatpush1.xpose.msra.mxu0 0.0
    %464 = vmatprep.subr.mxu0 0.0
    %465 = vmatpush1.xpose.msra.mxu0 0.0
    %466 = vmatprep.subr.mxu0 0.0
    %467 = vmatpush1.xpose.msra.mxu0 0.0
    %468 = vmatprep.subr.mxu0 0.0
    %469 = vmatpush1.xpose.msra.mxu0 0.0
    %470 = vmatprep.subr.mxu0 0.0
    %471 = vmatpush1.xpose.msra.mxu0 0.0
    %472 = vmatprep.subr.mxu0 0.0
    %473 = vmatpush1.xpose.msra.mxu0 0.0
    %474 = vmatprep.subr.mxu0 0.0
    %475 = vmatpush1.xpose.msra.mxu0 0.0
    %476 = vmatprep.subr.mxu0 0.0
    %477 = vmatpush1.xpose.msra.mxu0 0.0
    %478 = vmatprep.subr.mxu0 0.0
    %479 = vmatpush1.xpose.msra.mxu0 0.0
    %480 = vmatprep.subr.mxu0 0.0
    %481 = vmatpush1.xpose.msra.mxu0 0.0
    %482 = vmatprep.subr.mxu0 0.0
    %483 = vmatpush1.xpose.msra.mxu0 0.0
    %484 = vmatprep.subr.mxu0 0.0
    %485 = vmatpush1.xpose.msra.mxu0 0.0
    %486 = vmatprep.subr.mxu0 0.0
    %487 = vmatpush1.xpose.msra.mxu0 0.0
    %488 = vmatprep.subr.mxu0 0.0
    %489 = vmatpush1.xpose.msra.mxu0 0.0
    %490 = vmatprep.subr.mxu0 0.0
    %491 = vmatpush1.xpose.msra.mxu0 0.0
    %492 = vmatprep.subr.mxu0 0.0
    %493 = vmatpush1.xpose.msra.mxu0 0.0
    %494 = vmatprep.subr.mxu0 0.0
    %495 = vmatpush1.xpose.msra.mxu0 0.0
    %496 = vmatprep.mubr.f32.mxu0 0.0
    %497 = vmatmul.mubr.f32.gmra.mrb[0].mxu0 %v324
    %v498 = vpop.f32.mrb[0].mxu0
    %v499 = vadd.f32 0.0, %v498
    %v500 = vpop.f32.mrb[0].mxu0
    %501 = vmatprep.mubr.f32.mxu0 0.0
    %502 = vmatmul.mubr.f32.gmra.mrb[0].mxu0 %v327
    %v503 = vpop.f32.mrb[0].mxu0
    %v504 = vadd.f32 0.0, %v503
    %v505 = vpop.f32.mrb[0].mxu0
    %506 = vmatprep.mubr.f32.mxu0 0.0
    %507 = vmatmul.mubr.f32.gmra.mrb[0].mxu0 %v330
    %v508 = vpop.f32.mrb[0].mxu0
    %v509 = vadd.f32 0.0, %v508
    %v510 = vpop.f32.mrb[0].mxu0
    %511 = vmatprep.mubr.f32.mxu0 0.0
    %512 = vmatmul.mubr.f32.gmra.mrb[0].mxu0 %v333
    %v513 = vpop.f32.mrb[0].mxu0
    %v514 = vadd.f32 0.0, %v513
    %v515 = vpop.f32.mrb[0].mxu0
    %516 = vdwg.mxu0
    %vm517 = vcmask 130048
    %v518 = vsel %vm517, %v408, -inf
    %519 = vmax.xlane.f32.xlu0 %v518
    %v520 = vpop.xlane.xlu0 %519
    %v521 = vsel %vm517, %v413, -inf
    %522 = vmax.xlane.f32.xlu0 %v521
    %v523 = vpop.xlane.xlu0 %522
    %v524 = vsel %vm517, %v418, -inf
    %525 = vmax.xlane.f32.xlu0 %v524
    %v526 = vpop.xlane.xlu0 %525
    %v527 = vsel %vm517, %v423, -inf
    %528 = vmax.xlane.f32.xlu0 %v527
    %v529 = vpop.xlane.xlu0 %528
    %v530 = vsel %vm517, %v499, -inf
    %531 = vmax.xlane.f32.xlu0 %v530
    %v532 = vpop.xlane.xlu0 %531
    %v533 = vsel %vm517, %v504, -inf
    %534 = vmax.xlane.f32.xlu0 %v533
    %v535 = vpop.xlane.xlu0 %534
    %v536 = vsel %vm517, %v509, -inf
    %537 = vmax.xlane.f32.xlu0 %v536
    %v538 = vpop.xlane.xlu0 %537
    %v539 = vsel %vm517, %v514, -inf
    %540 = vmax.xlane.f32.xlu0 %v539
    %v541 = vpop.xlane.xlu0 %540
    %v542 = vsub.f32 %v408, %v520
    %v543 = vsub.f32 %v413, %v523
    %v544 = vsub.f32 %v418, %v526
    %v545 = vsub.f32 %v423, %v529
    %v546 = vsub.f32 %v499, %v532
    %v547 = vsub.f32 %v504, %v535
    %v548 = vsub.f32 %v509, %v538
    %v549 = vsub.f32 %v514, %v541
    %v550 = vmul.f32 %v542, 1.442695
    %v551 = vpow.pop %v550
    %v552 = vmul.f32 %v543, 1.442695
    %v553 = vpow.pop %v552
    %v554 = vmul.f32 %v544, 1.442695
    %v555 = vpow.pop %v554
    %v556 = vmul.f32 %v545, 1.442695
    %v557 = vpow.pop %v556
    %v558 = vmul.f32 %v546, 1.442695
    %v559 = vpow.pop %v558
    %v560 = vmul.f32 %v547, 1.442695
    %v561 = vpow.pop %v560
    %v562 = vmul.f32 %v548, 1.442695
    %v563 = vpow.pop %v562
    %v564 = vmul.f32 %v549, 1.442695
    %v565 = vpow.pop %v564
    %v566 = vsel %vm517, %v551, 0.0
    %567 = vadd.xlane.f32.xlu0 %v566
    %v568 = vpop.xlane.xlu0 %567
    %v569 = vsel %vm517, %v553, 0.0
    %570 = vadd.xlane.f32.xlu0 %v569
    %v571 = vpop.xlane.xlu0 %570
    %v572 = vsel %vm517, %v555, 0.0
    %573 = vadd.xlane.f32.xlu0 %v572
    %v574 = vpop.xlane.xlu0 %573
    %v575 = vsel %vm517, %v557, 0.0
    %576 = vadd.xlane.f32.xlu0 %v575
    %v577 = vpop.xlane.xlu0 %576
    %v578 = vsel %vm517, %v559, 0.0
    %579 = vadd.xlane.f32.xlu0 %v578
    %v580 = vpop.xlane.xlu0 %579
    %v581 = vsel %vm517, %v561, 0.0
    %582 = vadd.xlane.f32.xlu0 %v581
    %v583 = vpop.xlane.xlu0 %582
    %v584 = vsel %vm517, %v563, 0.0
    %585 = vadd.xlane.f32.xlu0 %v584
    %v586 = vpop.xlane.xlu0 %585
    %v587 = vsel %vm517, %v565, 0.0
    %588 = vadd.xlane.f32.xlu0 %v587
    %v589 = vpop.xlane.xlu0 %588
    %v590 = vrcp.pop %v568
    %v591 = vmul.f32 %v551, %v590
    %v592 = vrcp.pop %v571
    %v593 = vmul.f32 %v553, %v592
    %v594 = vrcp.pop %v574
    %v595 = vmul.f32 %v555, %v594
    %v596 = vrcp.pop %v577
    %v597 = vmul.f32 %v557, %v596
    %v598 = vrcp.pop %v580
    %v599 = vmul.f32 %v559, %v598
    %v600 = vrcp.pop %v583
    %v601 = vmul.f32 %v561, %v600
    %v602 = vrcp.pop %v586
    %v603 = vmul.f32 %v563, %v602
    %v604 = vrcp.pop %v589
    %v605 = vmul.f32 %v565, %v604
    %606 = vst.msk [vmem:[#allocation4] sm:$0xff] %vm517, %v591
    %607 = vst.msk [vmem:[#allocation4 + $0x8] sm:$0xff] %vm517, %v593
    %608 = vst.msk [vmem:[#allocation4 + $0x10] sm:$0xff] %vm517, %v595
    %609 = vst.msk [vmem:[#allocation4 + $0x18] sm:$0xff] %vm517, %v597
    %610 = vst.msk [vmem:[#allocation4 + $0x20] sm:$0xff] %vm517, %v599
    %611 = vst.msk [vmem:[#allocation4 + $0x28] sm:$0xff] %vm517, %v601
    %612 = vst.msk [vmem:[#allocation4 + $0x30] sm:$0xff] %vm517, %v603
    %613 = vst.msk [vmem:[#allocation4 + $0x38] sm:$0xff] %vm517, %v605
    %614 = vrot.lane.b32.xlu0 %v300, 64
    %v615 = vpop.permute.xlu0 %614
    %616 = vrot.lane.b32.xlu0 %v305, 64
    %v617 = vpop.permute.xlu0 %616
    %v621 = vsel %vm517, %v591, 0
    %v624 = vsel %vm517, %v593, 0
    %v627 = vsel %vm517, %v595, 0
    %v630 = vsel %vm517, %v597, 0
    %632 = vmatprep.subr.mxu0 0.0
    %633 = vmatpush1.msra.mxu0 %v615
    %634 = vmatprep.subr.mxu0 0.0
    %635 = vmatpush1.msra.mxu0 %v617
    %636 = vmatprep.subr.mxu0 0.0
    %637 = vmatpush1.msra.mxu0 0.0
    %638 = vmatprep.subr.mxu0 0.0
    %639 = vmatpush1.msra.mxu0 0.0
    %640 = vmatprep.subr.mxu0 0.0
    %641 = vmatpush1.msra.mxu0 0.0
    %642 = vmatprep.subr.mxu0 0.0
    %643 = vmatpush1.msra.mxu0 0.0
    %644 = vmatprep.subr.mxu0 0.0
    %645 = vmatpush1.msra.mxu0 0.0
    %646 = vmatprep.subr.mxu0 0.0
    %647 = vmatpush1.msra.mxu0 0.0
    %648 = vmatprep.subr.mxu0 0.0
    %649 = vmatpush1.msra.mxu0 0.0
    %650 = vmatprep.subr.mxu0 0.0
    %651 = vmatpush1.msra.mxu0 0.0
    %652 = vmatprep.subr.mxu0 0.0
    %653 = vmatpush1.msra.mxu0 0.0
    %654 = vmatprep.subr.mxu0 0.0
    %655 = vmatpush1.msra.mxu0 0.0
    %656 = vmatprep.subr.mxu0 0.0
    %657 = vmatpush1.msra.mxu0 0.0
    %658 = vmatprep.subr.mxu0 0.0
    %659 = vmatpush1.msra.mxu0 0.0
    %660 = vmatprep.subr.mxu0 0.0
    %661 = vmatpush1.msra.mxu0 0.0
    %662 = vmatprep.subr.mxu0 0.0
    %663 = vmatpush1.msra.mxu0 0.0
    %664 = vmatprep.subr.mxu0 0.0
    %665 = vmatpush1.msra.mxu0 0.0
    %666 = vmatprep.subr.mxu0 0.0
    %667 = vmatpush1.msra.mxu0 0.0
    %668 = vmatprep.subr.mxu0 0.0
    %669 = vmatpush1.msra.mxu0 0.0
    %670 = vmatprep.subr.mxu0 0.0
    %671 = vmatpush1.msra.mxu0 0.0
    %672 = vmatprep.subr.mxu0 0.0
    %673 = vmatpush1.msra.mxu0 0.0
    %674 = vmatprep.subr.mxu0 0.0
    %675 = vmatpush1.msra.mxu0 0.0
    %676 = vmatprep.subr.mxu0 0.0
    %677 = vmatpush1.msra.mxu0 0.0
    %678 = vmatprep.subr.mxu0 0.0
    %679 = vmatpush1.msra.mxu0 0.0
    %680 = vmatprep.subr.mxu0 0.0
    %681 = vmatpush1.msra.mxu0 0.0
    %682 = vmatprep.subr.mxu0 0.0
    %683 = vmatpush1.msra.mxu0 0.0
    %684 = vmatprep.subr.mxu0 0.0
    %685 = vmatpush1.msra.mxu0 0.0
    %686 = vmatprep.subr.mxu0 0.0
    %687 = vmatpush1.msra.mxu0 0.0
    %688 = vmatprep.subr.mxu0 0.0
    %689 = vmatpush1.msra.mxu0 0.0
    %690 = vmatprep.subr.mxu0 0.0
    %691 = vmatpush1.msra.mxu0 0.0
    %692 = vmatprep.subr.mxu0 0.0
    %693 = vmatpush1.msra.mxu0 0.0
    %694 = vmatprep.subr.mxu0 0.0
    %695 = vmatpush1.msra.mxu0 0.0
    %696 = vmatprep.mubr.f32.mxu0 0.0
    %697 = vmatmul.mubr.f32.gmra.mrb[0].mxu0 %v621
    %v698 = vpop.f32.mrb[0].mxu0
    %v699 = vadd.f32 0.0, %v698
    %v700 = vpop.f32.mrb[0].mxu0
    %701 = vmatprep.mubr.f32.mxu0 0.0
    %702 = vmatmul.mubr.f32.gmra.mrb[0].mxu0 %v624
    %v703 = vpop.f32.mrb[0].mxu0
    %v704 = vadd.f32 0.0, %v703
    %v705 = vpop.f32.mrb[0].mxu0
    %706 = vmatprep.mubr.f32.mxu0 0.0
    %707 = vmatmul.mubr.f32.gmra.mrb[0].mxu0 %v627
    %v708 = vpop.f32.mrb[0].mxu0
    %v709 = vadd.f32 0.0, %v708
    %v710 = vpop.f32.mrb[0].mxu0
    %711 = vmatprep.mubr.f32.mxu0 0.0
    %712 = vmatmul.mubr.f32.gmra.mrb[0].mxu0 %v630
    %v713 = vpop.f32.mrb[0].mxu0
    %v714 = vadd.f32 0.0, %v713
    %v715 = vpop.f32.mrb[0].mxu0
    %716 = vdwg.mxu0
    %717 = vrot.lane.b32.xlu0 %v310, 64
    %v718 = vpop.permute.xlu0 %717
    %719 = vrot.lane.b32.xlu0 %v315, 64
    %v720 = vpop.permute.xlu0 %719
    %v724 = vsel %vm517, %v599, 0
    %v727 = vsel %vm517, %v601, 0
    %v730 = vsel %vm517, %v603, 0
    %v733 = vsel %vm517, %v605, 0
    %735 = vmatprep.subr.mxu0 0.0
    %736 = vmatpush1.msra.mxu0 %v718
    %737 = vmatprep.subr.mxu0 0.0
    %738 = vmatpush1.msra.mxu0 %v720
    %739 = vmatprep.subr.mxu0 0.0
    %740 = vmatpush1.msra.mxu0 0.0
    %741 = vmatprep.subr.mxu0 0.0
    %742 = vmatpush1.msra.mxu0 0.0
    %743 = vmatprep.subr.mxu0 0.0
    %744 = vmatpush1.msra.mxu0 0.0
    %745 = vmatprep.subr.mxu0 0.0
    %746 = vmatpush1.msra.mxu0 0.0
    %747 = vmatprep.subr.mxu0 0.0
    %748 = vmatpush1.msra.mxu0 0.0
    %749 = vmatprep.subr.mxu0 0.0
    %750 = vmatpush1.msra.mxu0 0.0
    %751 = vmatprep.subr.mxu0 0.0
    %752 = vmatpush1.msra.mxu0 0.0
    %753 = vmatprep.subr.mxu0 0.0
    %754 = vmatpush1.msra.mxu0 0.0
    %755 = vmatprep.subr.mxu0 0.0
    %756 = vmatpush1.msra.mxu0 0.0
    %757 = vmatprep.subr.mxu0 0.0
    %758 = vmatpush1.msra.mxu0 0.0
    %759 = vmatprep.subr.mxu0 0.0
    %760 = vmatpush1.msra.mxu0 0.0
    %761 = vmatprep.subr.mxu0 0.0
    %762 = vmatpush1.msra.mxu0 0.0
    %763 = vmatprep.subr.mxu0 0.0
    %764 = vmatpush1.msra.mxu0 0.0
    %765 = vmatprep.subr.mxu0 0.0
    %766 = vmatpush1.msra.mxu0 0.0
    %767 = vmatprep.subr.mxu0 0.0
    %768 = vmatpush1.msra.mxu0 0.0
    %769 = vmatprep.subr.mxu0 0.0
    %770 = vmatpush1.msra.mxu0 0.0
    %771 = vmatprep.subr.mxu0 0.0
    %772 = vmatpush1.msra.mxu0 0.0
    %773 = vmatprep.subr.mxu0 0.0
    %774 = vmatpush1.msra.mxu0 0.0
    %775 = vmatprep.subr.mxu0 0.0
    %776 = vmatpush1.msra.mxu0 0.0
    %777 = vmatprep.subr.mxu0 0.0
    %778 = vmatpush1.msra.mxu0 0.0
    %779 = vmatprep.subr.mxu0 0.0
    %780 = vmatpush1.msra.mxu0 0.0
    %781 = vmatprep.subr.mxu0 0.0
    %782 = vmatpush1.msra.mxu0 0.0
    %783 = vmatprep.subr.mxu0 0.0
    %784 = vmatpush1.msra.mxu0 0.0
    %785 = vmatprep.subr.mxu0 0.0
    %786 = vmatpush1.msra.mxu0 0.0
    %787 = vmatprep.subr.mxu0 0.0
    %788 = vmatpush1.msra.mxu0 0.0
    %789 = vmatprep.subr.mxu0 0.0
    %790 = vmatpush1.msra.mxu0 0.0
    %791 = vmatprep.subr.mxu0 0.0
    %792 = vmatpush1.msra.mxu0 0.0
    %793 = vmatprep.subr.mxu0 0.0
    %794 = vmatpush1.msra.mxu0 0.0
    %795 = vmatprep.subr.mxu0 0.0
    %796 = vmatpush1.msra.mxu0 0.0
    %797 = vmatprep.subr.mxu0 0.0
    %798 = vmatpush1.msra.mxu0 0.0
    %799 = vmatprep.mubr.f32.mxu0 0.0
    %800 = vmatmul.mubr.f32.gmra.mrb[0].mxu0 %v724
    %v801 = vpop.f32.mrb[0].mxu0
    %v802 = vadd.f32 0.0, %v801
    %v803 = vpop.f32.mrb[0].mxu0
    %804 = vmatprep.mubr.f32.mxu0 0.0
    %805 = vmatmul.mubr.f32.gmra.mrb[0].mxu0 %v727
    %v806 = vpop.f32.mrb[0].mxu0
    %v807 = vadd.f32 0.0, %v806
    %v808 = vpop.f32.mrb[0].mxu0
    %809 = vmatprep.mubr.f32.mxu0 0.0
    %810 = vmatmul.mubr.f32.gmra.mrb[0].mxu0 %v730
    %v811 = vpop.f32.mrb[0].mxu0
    %v812 = vadd.f32 0.0, %v811
    %v813 = vpop.f32.mrb[0].mxu0
    %814 = vmatprep.mubr.f32.mxu0 0.0
    %815 = vmatmul.mubr.f32.gmra.mrb[0].mxu0 %v733
    %v816 = vpop.f32.mrb[0].mxu0
    %v817 = vadd.f32 0.0, %v816
    %v818 = vpop.f32.mrb[0].mxu0
    %819 = vdwg.mxu0
    %v820 = vmul.f32 %v699, %v38
    %v821 = vmul.f32 %v704, %v39
    %v822 = vmul.f32 %v709, %v40
    %v823 = vmul.f32 %v714, %v41
    %v824 = vmul.f32 %v802, %v38
    %v825 = vmul.f32 %v807, %v39
    %v826 = vmul.f32 %v812, %v40
    %v827 = vmul.f32 %v817, %v41
    %v828 = vld [vmem:[%s4] sm:$0xff]
    %v829 = vld [vmem:[%s4 + $0x8] sm:$0xff]
    %v830 = vld [vmem:[%s4 + $0x10] sm:$0xff]
    %v831 = vld [vmem:[%s4 + $0x18] sm:$0xff]
    %v832 = vld [vmem:[%s4 + $0x20] sm:$0xff]
    %v833 = vld [vmem:[%s4 + $0x28] sm:$0xff]
    %v834 = vld [vmem:[%s4 + $0x30] sm:$0xff]
    %v835 = vld [vmem:[%s4 + $0x38] sm:$0xff]
    %v837 = vsel %vm322, %v820, 0
    %v840 = vsel %vm322, %v821, 0
    %v843 = vsel %vm322, %v822, 0
    %v846 = vsel %vm322, %v823, 0
    %v849 = vsel %vm322, %v824, 0
    %v852 = vsel %vm322, %v825, 0
    %v855 = vsel %vm322, %v826, 0
    %v858 = vsel %vm322, %v827, 0
    %860 = vmatprep.subr.mxu0 0.0
    %861 = vmatpush1.msra.mxu0 %v828
    %862 = vmatprep.subr.mxu0 0.0
    %863 = vmatpush1.msra.mxu0 %v829
    %864 = vmatprep.subr.mxu0 0.0
    %865 = vmatpush1.msra.mxu0 %v830
    %866 = vmatprep.subr.mxu0 0.0
    %867 = vmatpush1.msra.mxu0 %v831
    %868 = vmatprep.subr.mxu0 0.0
    %869 = vmatpush1.msra.mxu0 %v832
    %870 = vmatprep.subr.mxu0 0.0
    %871 = vmatpush1.msra.mxu0 %v833
    %872 = vmatprep.subr.mxu0 0.0
    %873 = vmatpush1.msra.mxu0 %v834
    %874 = vmatprep.subr.mxu0 0.0
    %875 = vmatpush1.msra.mxu0 %v835
    %876 = vmatprep.subr.mxu0 0.0
    %877 = vmatpush1.msra.mxu0 0.0
    %878 = vmatprep.subr.mxu0 0.0
    %879 = vmatpush1.msra.mxu0 0.0
    %880 = vmatprep.subr.mxu0 0.0
    %881 = vmatpush1.msra.mxu0 0.0
    %882 = vmatprep.subr.mxu0 0.0
    %883 = vmatpush1.msra.mxu0 0.0
    %884 = vmatprep.subr.mxu0 0.0
    %885 = vmatpush1.msra.mxu0 0.0
    %886 = vmatprep.subr.mxu0 0.0
    %887 = vmatpush1.msra.mxu0 0.0
    %888 = vmatprep.subr.mxu0 0.0
    %889 = vmatpush1.msra.mxu0 0.0
    %890 = vmatprep.subr.mxu0 0.0
    %891 = vmatpush1.msra.mxu0 0.0
    %892 = vmatprep.subr.mxu0 0.0
    %893 = vmatpush1.msra.mxu0 0.0
    %894 = vmatprep.subr.mxu0 0.0
    %895 = vmatpush1.msra.mxu0 0.0
    %896 = vmatprep.subr.mxu0 0.0
    %897 = vmatpush1.msra.mxu0 0.0
    %898 = vmatprep.subr.mxu0 0.0
    %899 = vmatpush1.msra.mxu0 0.0
    %900 = vmatprep.subr.mxu0 0.0
    %901 = vmatpush1.msra.mxu0 0.0
    %902 = vmatprep.subr.mxu0 0.0
    %903 = vmatpush1.msra.mxu0 0.0
    %904 = vmatprep.subr.mxu0 0.0
    %905 = vmatpush1.msra.mxu0 0.0
    %906 = vmatprep.subr.mxu0 0.0
    %907 = vmatpush1.msra.mxu0 0.0
    %908 = vmatprep.subr.mxu0 0.0
    %909 = vmatpush1.msra.mxu0 0.0
    %910 = vmatprep.subr.mxu0 0.0
    %911 = vmatpush1.msra.mxu0 0.0
    %912 = vmatprep.subr.mxu0 0.0
    %913 = vmatpush1.msra.mxu0 0.0
    %914 = vmatprep.subr.mxu0 0.0
    %915 = vmatpush1.msra.mxu0 0.0
    %916 = vmatprep.subr.mxu0 0.0
    %917 = vmatpush1.msra.mxu0 0.0
    %918 = vmatprep.subr.mxu0 0.0
    %919 = vmatpush1.msra.mxu0 0.0
    %920 = vmatprep.subr.mxu0 0.0
    %921 = vmatpush1.msra.mxu0 0.0
    %922 = vmatprep.subr.mxu0 0.0
    %923 = vmatpush1.msra.mxu0 0.0
    %924 = vmatprep.mubr.f32.mxu0 0.0
    %925 = vmatmul.mubr.f32.gmra.mrb[0].mxu0 %v837
    %v926 = vpop.f32.mrb[0].mxu0
    %v927 = vadd.f32 0.0, %v926
    %v928 = vpop.f32.mrb[0].mxu0
    %929 = vmatprep.mubr.f32.mxu0 0.0
    %930 = vmatmul.mubr.f32.gmra.mrb[0].mxu0 %v840
    %v931 = vpop.f32.mrb[0].mxu0
    %v932 = vadd.f32 0.0, %v931
    %v933 = vpop.f32.mrb[0].mxu0
    %934 = vmatprep.mubr.f32.mxu0 0.0
    %935 = vmatmul.mubr.f32.gmra.mrb[0].mxu0 %v843
    %v936 = vpop.f32.mrb[0].mxu0
    %v937 = vadd.f32 0.0, %v936
    %v938 = vpop.f32.mrb[0].mxu0
    %939 = vmatprep.mubr.f32.mxu0 0.0
    %940 = vmatmul.mubr.f32.gmra.mrb[0].mxu0 %v846
    %v941 = vpop.f32.mrb[0].mxu0
    %v942 = vadd.f32 0.0, %v941
    %v943 = vpop.f32.mrb[0].mxu0
    %944 = vmatprep.mubr.f32.mxu0 0.0
    %945 = vmatmul.mubr.f32.gmra.mrb[0].mxu0 %v849
    %v946 = vpop.f32.mrb[0].mxu0
    %v947 = vadd.f32 0.0, %v946
    %v948 = vpop.f32.mrb[0].mxu0
    %949 = vmatprep.mubr.f32.mxu0 0.0
    %950 = vmatmul.mubr.f32.gmra.mrb[0].mxu0 %v852
    %v951 = vpop.f32.mrb[0].mxu0
    %v952 = vadd.f32 0.0, %v951
    %v953 = vpop.f32.mrb[0].mxu0
    %954 = vmatprep.mubr.f32.mxu0 0.0
    %955 = vmatmul.mubr.f32.gmra.mrb[0].mxu0 %v855
    %v956 = vpop.f32.mrb[0].mxu0
    %v957 = vadd.f32 0.0, %v956
    %v958 = vpop.f32.mrb[0].mxu0
    %959 = vmatprep.mubr.f32.mxu0 0.0
    %960 = vmatmul.mubr.f32.gmra.mrb[0].mxu0 %v858
    %v961 = vpop.f32.mrb[0].mxu0
    %v962 = vadd.f32 0.0, %v961
    %v963 = vpop.f32.mrb[0].mxu0
    %964 = vdwg.mxu0
    %v965 = vadd.f32 %v927, %v932
    %v966 = vadd.f32 %v947, %v952
    %v967 = vadd.f32 %v965, %v937
    %v968 = vadd.f32 %v966, %v957
    %v969 = vadd.f32 %v967, %v942
    %v970 = vadd.f32 %v968, %v962
    %v971 = vlaneseq
    %v972 = vshrl.u32 %v971, 7
    %v973 = vsub.s32 4, %v972
    %v974 = vrot.slane %v36, %v973
    %v975 = vadd.f32 %v969, %v974
    %v976 = vadd.f32 %v970, %v974
    %v977 = vsel %vm43, %v975, 0.0
    %v978 = vsel %vm43, %v976, 0.0
    %v979 = vadd.f32 %v977, %v978
    %v980 = vrot.slane %v979, 4
    %v981 = vadd.f32 %v979, %v980
    %v982 = vrot.slane %v981, 2
    %v983 = vadd.f32 %v981, %v982
    %v984 = vrot.slane %v983, 1
    %v985 = vadd.f32 %v983, %v984
    %v986 = vrcp.pop 16.0
    %v987 = vmul.f32 %v985, %v986
    %v988 = vsub.f32 %v975, %v987
    %v989 = vsub.f32 %v976, %v987
    %v990 = vmul.f32 %v988, %v988
    %v991 = vmul.f32 %v989, %v989
    %v992 = vsel %vm43, %v990, 0.0
    %v993 = vsel %vm43, %v991, 0.0
    %v994 = vadd.f32 %v992, %v993
    %v995 = vrot.slane %v994, 4
    %v996 = vadd.f32 %v994, %v995
    %v997 = vrot.slane %v996, 2
    %v998 = vadd.f32 %v996, %v997
    %v999 = vrot.slane %v998, 1
    %v1000 = vadd.f32 %v998, %v999
    %v1001 = vmul.f32 %v1000, %v986
    %v1002 = vadd.f32 %v1001, 1e-05
    %v1003 = vrsqrt.pop %v1002
    %v1004 = vmul.f32 %v988, %v1003
    %v1005 = vmul.f32 %v989, %v1003
    %v1006 = vld [vmem:[%s5] sm:$0xff]
    %v1007 = vld [vmem:[%s5 + $0x8] sm:$0xff]
    %v1008 = vld [vmem:[%s5 + $0x10] sm:$0xff]
    %v1009 = vld [vmem:[%s5 + $0x18] sm:$0xff]
    %v1010 = vlaneseq
    %v1011 = vshrl.u32 %v1010, 7
    %v1012 = vsub.s32 6, %v1011
    %v1013 = vrot.slane %v36, %v1012
    %v1015 = vsel %vm43, %v1004, 0
    %v1018 = vsel %vm43, %v1005, 0
    %1020 = vmatprep.subr.mxu0 0.0
    %1021 = vmatpush1.msra.mxu0 %v1006
    %1022 = vmatprep.subr.mxu0 0.0
    %1023 = vmatpush1.msra.mxu0 %v1007
    %1024 = vmatprep.subr.mxu0 0.0
    %1025 = vmatpush1.msra.mxu0 %v1008
    %1026 = vmatprep.subr.mxu0 0.0
    %1027 = vmatpush1.msra.mxu0 %v1009
    %1028 = vmatprep.subr.mxu0 0.0
    %1029 = vmatpush1.msra.mxu0 0.0
    %1030 = vmatprep.subr.mxu0 0.0
    %1031 = vmatpush1.msra.mxu0 0.0
    %1032 = vmatprep.subr.mxu0 0.0
    %1033 = vmatpush1.msra.mxu0 0.0
    %1034 = vmatprep.subr.mxu0 0.0
    %1035 = vmatpush1.msra.mxu0 0.0
    %1036 = vmatprep.subr.mxu0 0.0
    %1037 = vmatpush1.msra.mxu0 0.0
    %1038 = vmatprep.subr.mxu0 0.0
    %1039 = vmatpush1.msra.mxu0 0.0
    %1040 = vmatprep.subr.mxu0 0.0
    %1041 = vmatpush1.msra.mxu0 0.0
    %1042 = vmatprep.subr.mxu0 0.0
    %1043 = vmatpush1.msra.mxu0 0.0
    %1044 = vmatprep.subr.mxu0 0.0
    %1045 = vmatpush1.msra.mxu0 0.0
    %1046 = vmatprep.subr.mxu0 0.0
    %1047 = vmatpush1.msra.mxu0 0.0
    %1048 = vmatprep.subr.mxu0 0.0
    %1049 = vmatpush1.msra.mxu0 0.0
    %1050 = vmatprep.subr.mxu0 0.0
    %1051 = vmatpush1.msra.mxu0 0.0
    %1052 = vmatprep.subr.mxu0 0.0
    %1053 = vmatpush1.msra.mxu0 0.0
    %1054 = vmatprep.subr.mxu0 0.0
    %1055 = vmatpush1.msra.mxu0 0.0
    %1056 = vmatprep.subr.mxu0 0.0
    %1057 = vmatpush1.msra.mxu0 0.0
    %1058 = vmatprep.subr.mxu0 0.0
    %1059 = vmatpush1.msra.mxu0 0.0
    %1060 = vmatprep.subr.mxu0 0.0
    %1061 = vmatpush1.msra.mxu0 0.0
    %1062 = vmatprep.subr.mxu0 0.0
    %1063 = vmatpush1.msra.mxu0 0.0
    %1064 = vmatprep.subr.mxu0 0.0
    %1065 = vmatpush1.msra.mxu0 0.0
    %1066 = vmatprep.subr.mxu0 0.0
    %1067 = vmatpush1.msra.mxu0 0.0
    %1068 = vmatprep.subr.mxu0 0.0
    %1069 = vmatpush1.msra.mxu0 0.0
    %1070 = vmatprep.subr.mxu0 0.0
    %1071 = vmatpush1.msra.mxu0 0.0
    %1072 = vmatprep.subr.mxu0 0.0
    %1073 = vmatpush1.msra.mxu0 0.0
    %1074 = vmatprep.subr.mxu0 0.0
    %1075 = vmatpush1.msra.mxu0 0.0
    %1076 = vmatprep.subr.mxu0 0.0
    %1077 = vmatpush1.msra.mxu0 0.0
    %1078 = vmatprep.subr.mxu0 0.0
    %1079 = vmatpush1.msra.mxu0 0.0
    %1080 = vmatprep.subr.mxu0 0.0
    %1081 = vmatpush1.msra.mxu0 0.0
    %1082 = vmatprep.subr.mxu0 0.0
    %1083 = vmatpush1.msra.mxu0 0.0
    %1084 = vmatprep.mubr.f32.mxu0 0.0
    %1085 = vmatmul.mubr.f32.gmra.mrb[0].mxu0 %v1015
    %v1086 = vpop.f32.mrb[0].mxu0
    %v1087 = vadd.f32 %v1013, %v1086
    %v1088 = vpop.f32.mrb[0].mxu0
    %1089 = vmatprep.mubr.f32.mxu0 0.0
    %1090 = vmatmul.mubr.f32.gmra.mrb[0].mxu0 %v1018
    %v1091 = vpop.f32.mrb[0].mxu0
    %v1092 = vadd.f32 %v1013, %v1091
    %v1093 = vpop.f32.mrb[0].mxu0
    %1094 = vdwg.mxu0
    %v1095 = vadd.f32 %v1087, %v1092
    %v1096 = vrot.slane %v1095, 4
    %v1097 = vadd.f32 %v1095, %v1096
    %v1098 = vrot.slane %v1097, 2
    %v1099 = vadd.f32 %v1097, %v1098
    %v1100 = vrot.slane %v1099, 1
    %v1101 = vadd.f32 %v1099, %v1100
    %v1102 = vmul.f32 %v1101, %v986
    %v1103 = vsub.f32 %v1087, %v1102
    %v1104 = vsub.f32 %v1092, %v1102
    %v1105 = vmul.f32 %v1103, %v1103
    %v1106 = vmul.f32 %v1104, %v1104
    %v1107 = vadd.f32 %v1105, %v1106
    %v1108 = vrot.slane %v1107, 4
    %v1109 = vadd.f32 %v1107, %v1108
    %v1110 = vrot.slane %v1109, 2
    %v1111 = vadd.f32 %v1109, %v1110
    %v1112 = vrot.slane %v1111, 1
    %v1113 = vadd.f32 %v1111, %v1112
    %v1114 = vmul.f32 %v1113, %v986
    %v1115 = vadd.f32 %v1114, 1e-05
    %v1116 = vrsqrt.pop %v1115
    %v1117 = vmul.f32 %v1103, %v1116
    %v1118 = vmul.f32 %v1104, %v1116
    %v1119 = vlaneseq
    %v1120 = vshrl.u32 %v1119, 7
    %v1121 = vsub.s32 7, %v1120
    %v1122 = vrot.slane %v36, %v1121
    %v1123 = vmul.f32 %v1117, %v1122
    %v1124 = vmul.f32 %v1118, %v1122
    %v1125 = vlaneseq
    %v1126 = vshrl.u32 %v1125, 7
    %v1127 = vsub.s32 0, %v1126
    %v1128 = vrot.slane %v37, %v1127
    %v1129 = vadd.f32 %v1123, %v1128
    %v1130 = vadd.f32 %v1124, %v1128
    %v1131 = vmul.f32 %v1129, 1.702
    %v1132 = vmul.f32 %v1130, 1.702
    %v1133 = vxor.u32 %v1131, 2147483648
    %v1134 = vxor.u32 %v1132, 2147483648
    %v1135 = vmul.f32 %v1133, 1.442695
    %v1136 = vpow.pop %v1135
    %v1137 = vmul.f32 %v1134, 1.442695
    %v1138 = vpow.pop %v1137
    %v1139 = vadd.f32 %v1136, 1.0
    %v1140 = vadd.f32 %v1138, 1.0
    %v1141 = vrcp.pop %v1139
    %v1142 = vmul.f32 1.0, %v1141
    %v1143 = vrcp.pop %v1140
    %v1144 = vmul.f32 1.0, %v1143
    %v1145 = vmul.f32 %v1129, %v1142
    %v1146 = vmul.f32 %v1130, %v1144
    %v1147 = vld [vmem:[%s6] sm:$0xff]
    %v1148 = vld [vmem:[%s6 + $0x8] sm:$0xff]
    %v1149 = vld [vmem:[%s6 + $0x10] sm:$0xff]
    %v1150 = vld [vmem:[%s6 + $0x18] sm:$0xff]
    %v1151 = vld [vmem:[%s6 + $0x20] sm:$0xff]
    %v1152 = vld [vmem:[%s6 + $0x28] sm:$0xff]
    %v1153 = vld [vmem:[%s6 + $0x30] sm:$0xff]
    %v1154 = vld [vmem:[%s6 + $0x38] sm:$0xff]
    %v1155 = vld [vmem:[%s6 + $0x40] sm:$0xff]
    %v1156 = vld [vmem:[%s6 + $0x48] sm:$0xff]
    %v1157 = vld [vmem:[%s6 + $0x50] sm:$0xff]
    %v1158 = vld [vmem:[%s6 + $0x58] sm:$0xff]
    %v1159 = vld [vmem:[%s6 + $0x60] sm:$0xff]
    %v1160 = vld [vmem:[%s6 + $0x68] sm:$0xff]
    %v1161 = vld [vmem:[%s6 + $0x70] sm:$0xff]
    %v1162 = vld [vmem:[%s6 + $0x78] sm:$0xff]
    %v1163 = vlaneseq
    %v1164 = vshrl.u32 %v1163, 7
    %v1165 = vsub.s32 5, %v1164
    %v1166 = vrot.slane %v36, %v1165
    %1167 = vmatprep.subr.mxu0 0.0
    %1168 = vmatpush1.msra.mxu0 %v1147
    %1169 = vmatprep.subr.mxu0 0.0
    %1170 = vmatpush1.msra.mxu0 %v1148
    %1171 = vmatprep.subr.mxu0 0.0
    %1172 = vmatpush1.msra.mxu0 %v1149
    %1173 = vmatprep.subr.mxu0 0.0
    %1174 = vmatpush1.msra.mxu0 %v1150
    %1175 = vmatprep.subr.mxu0 0.0
    %1176 = vmatpush1.msra.mxu0 %v1151
    %1177 = vmatprep.subr.mxu0 0.0
    %1178 = vmatpush1.msra.mxu0 %v1152
    %1179 = vmatprep.subr.mxu0 0.0
    %1180 = vmatpush1.msra.mxu0 %v1153
    %1181 = vmatprep.subr.mxu0 0.0
    %1182 = vmatpush1.msra.mxu0 %v1154
    %1183 = vmatprep.subr.mxu0 0.0
    %1184 = vmatpush1.msra.mxu0 %v1155
    %1185 = vmatprep.subr.mxu0 0.0
    %1186 = vmatpush1.msra.mxu0 %v1156
    %1187 = vmatprep.subr.mxu0 0.0
    %1188 = vmatpush1.msra.mxu0 %v1157
    %1189 = vmatprep.subr.mxu0 0.0
    %1190 = vmatpush1.msra.mxu0 %v1158
    %1191 = vmatprep.subr.mxu0 0.0
    %1192 = vmatpush1.msra.mxu0 %v1159
    %1193 = vmatprep.subr.mxu0 0.0
    %1194 = vmatpush1.msra.mxu0 %v1160
    %1195 = vmatprep.subr.mxu0 0.0
    %1196 = vmatpush1.msra.mxu0 %v1161
    %1197 = vmatprep.subr.mxu0 0.0
    %1198 = vmatpush1.msra.mxu0 %v1162
    %1199 = vmatprep.subr.mxu0 0.0
    %1200 = vmatpush1.msra.mxu0 0.0
    %1201 = vmatprep.subr.mxu0 0.0
    %1202 = vmatpush1.msra.mxu0 0.0
    %1203 = vmatprep.subr.mxu0 0.0
    %1204 = vmatpush1.msra.mxu0 0.0
    %1205 = vmatprep.subr.mxu0 0.0
    %1206 = vmatpush1.msra.mxu0 0.0
    %1207 = vmatprep.subr.mxu0 0.0
    %1208 = vmatpush1.msra.mxu0 0.0
    %1209 = vmatprep.subr.mxu0 0.0
    %1210 = vmatpush1.msra.mxu0 0.0
    %1211 = vmatprep.subr.mxu0 0.0
    %1212 = vmatpush1.msra.mxu0 0.0
    %1213 = vmatprep.subr.mxu0 0.0
    %1214 = vmatpush1.msra.mxu0 0.0
    %1215 = vmatprep.subr.mxu0 0.0
    %1216 = vmatpush1.msra.mxu0 0.0
    %1217 = vmatprep.subr.mxu0 0.0
    %1218 = vmatpush1.msra.mxu0 0.0
    %1219 = vmatprep.subr.mxu0 0.0
    %1220 = vmatpush1.msra.mxu0 0.0
    %1221 = vmatprep.subr.mxu0 0.0
    %1222 = vmatpush1.msra.mxu0 0.0
    %1223 = vmatprep.subr.mxu0 0.0
    %1224 = vmatpush1.msra.mxu0 0.0
    %1225 = vmatprep.subr.mxu0 0.0
    %1226 = vmatpush1.msra.mxu0 0.0
    %1227 = vmatprep.subr.mxu0 0.0
    %1228 = vmatpush1.msra.mxu0 0.0
    %1229 = vmatprep.subr.mxu0 0.0
    %1230 = vmatpush1.msra.mxu0 0.0
    %1231 = vmatprep.mubr.f32.mxu0 0.0
    %1232 = vmatmul.mubr.f32.gmra.mrb[0].mxu0 %v1145
    %v1233 = vpop.f32.mrb[0].mxu0
    %v1234 = vadd.f32 %v1166, %v1233
    %v1235 = vpop.f32.mrb[0].mxu0
    %1236 = vmatprep.mubr.f32.mxu0 0.0
    %1237 = vmatmul.mubr.f32.gmra.mrb[0].mxu0 %v1146
    %v1238 = vpop.f32.mrb[0].mxu0
    %v1239 = vadd.f32 %v1166, %v1238
    %v1240 = vpop.f32.mrb[0].mxu0
    %1241 = vdwg.mxu0
    %1242 = vst.msk [vmem:[#allocation2] sm:$0xff] %vm43, %v1234
    %1243 = vst.msk [vmem:[#allocation2 + $0x8] sm:$0xff] %vm43, %v1239
    // Predicated region
    $region38: #{cross_attention_block.1} parent=1 // pred_check
      _
    $region39: #{cross_attention_block.1} parent=1 // pred_check_branch
      %1245 = sbr.rel (0) target = $region41
    $region40: #{cross_attention_block.1} parent=1 // pred_region
      %s1247 = ssub.s32 256, 256
      %1248 = vsyncadd [#allocation3], %s1247
      %s1249 = sshll.u32 [#allocation2], 4
      %s1250 = int_to_ptr.vmem [resolvable:$true] %s1249
      %1255 = dma.vmem_to_hbm [thread:$0]  %s1250, 256, %s9, [#allocation3], 128, 128, 8
    $region41: #{cross_attention_block.1} parent=1 // pred_fallthru
      _
    // Predicated region
    $region42: #{cross_attention_block.1} parent=1 // pred_check
      _
    $region43: #{cross_attention_block.1} parent=1 // pred_check_branch
      %1257 = sbr.rel (0) target = $region45
    $region44: #{cross_attention_block.1} parent=1 // pred_region
      %s1259 = ssub.s32 1024, 1024
      %1260 = vsyncadd [#allocation5], %s1259
      %s1261 = sshll.u32 [#allocation4], 4
      %s1262 = int_to_ptr.vmem [resolvable:$true] %s1261
      %1267 = dma.vmem_to_hbm [thread:$0]  %s1262, 1024, %s10, [#allocation5], 128, 128, 8
    $region45: #{cross_attention_block.1} parent=1 // pred_fallthru
      _
    // Predicated region
    $region46: #{cross_attention_block.1} parent=1 // pred_check
      _
    $region47: #{cross_attention_block.1} parent=1 // pred_check_branch
      %1269 = sbr.rel (0) target = $region49
    $region48: #{cross_attention_block.1} parent=1 // pred_region
      %1270 = dma.done [#allocation3], 256
    $region49: #{cross_attention_block.1} parent=1 // pred_fallthru
      _
    // Predicated region
    $region50: #{cross_attention_block.1} parent=1 // pred_check
      _
    $region51: #{cross_attention_block.1} parent=1 // pred_check_branch
      %1272 = sbr.rel (0) target = $region53
    $region52: #{cross_attention_block.1} parent=1 // pred_region
      %1273 = dma.done [#allocation5], 1024
    $region53: #{cross_attention_block.1} parent=1 // pred_fallthru
      _
    %1274 = vsyncpa [#allocation3], 1
    %1275 = vsyncpa [#allocation5], 1

</llo_original>
